<compile_context>
chip_gen: v7x
topology: tpu7x:2x2x1
jax: 0.10.0
libtpu: 0.0.40
codegen_flags: <defaults>
</compile_context>

<pallas_src>
import functools
import math

import jax
import jax.numpy as jnp
from jax.experimental import pallas as pl
from jax.experimental.pallas import tpu as pltpu

NUM_HEADS = 4


def _self_attention_kernel(hidden_ref, mask_ref,
                           wq_ref, bq_ref, wk_ref, bk_ref, wv_ref, bv_ref,
                           out_ref, *, num_heads, approx_recip):
    x = hidden_ref[...]                     # (Bt, S, H), matmul dtype
    m = mask_ref[...]                       # (Bt, 1, S) f32, 1.0 = attend

    bt, s, h = x.shape
    hs = h // num_heads
    scale = 1.0 / math.sqrt(hs)
    mm_dtype = x.dtype

    # get_extended_attention_mask (attention_mask.dim() == 2, not decoder):
    ext = (1.0 - m) * -10000.0              # (Bt, 1, S) additive mask, f32
    # Hoisted broadcast: one (Bt, S, S) mask shared by every head.
    ext_b = jnp.broadcast_to(ext, (bt, s, s))

    # Q/K/V projections (nn.Linear): y = x @ W + b (W pre-transposed to
    # (H_in, H_out)).  Fold the batch into rows so each projection is one
    # dense MXU matmul; accumulate in f32; biases added in f32.
    x2 = x.reshape(bt * s, h)
    q = jnp.dot(x2, wq_ref[...], preferred_element_type=jnp.float32) + bq_ref[...]
    k = jnp.dot(x2, wk_ref[...], preferred_element_type=jnp.float32) + bk_ref[...]
    v = jnp.dot(x2, wv_ref[...], preferred_element_type=jnp.float32) + bv_ref[...]

    # transpose_for_scores: heads are contiguous hs-wide column groups.
    # Fold the 1/sqrt(hs) scale into Q once (f32), then drop to matmul dtype.
    q_mm = (q * scale).astype(mm_dtype).reshape(bt, s, h)
    k_mm = k.astype(mm_dtype).reshape(bt, s, h)
    v_mm = v.astype(mm_dtype).reshape(bt, s, h)

    ctxs = []
    for hd in range(num_heads):             # static, fully unrolled
        lo = hd * hs
        qh = q_mm[:, :, lo:lo + hs]         # (Bt, S, hs)
        kh = k_mm[:, :, lo:lo + hs]
        vh = v_mm[:, :, lo:lo + hs]

        # Q K^T without an explicit transpose: contract the last dims.
        scores = jnp.einsum('bqd,bkd->bqk', qh, kh,
                            preferred_element_type=jnp.float32)   # (Bt,S,S) f32
        scores = scores + ext_b

        # Softmax kept in f32 (v5e has no bf16 VPU/EUP path).
        smax = jnp.max(scores, axis=-1, keepdims=True)
        p = jnp.exp(scores - smax)
        denom = jnp.sum(p, axis=-1, keepdims=True)
        probs = p * pl.reciprocal(denom, approx=approx_recip)
        # TODO(synk): attention-probs dropout omitted (eval-mode identity).

        ctx = jnp.einsum('bqk,bkd->bqd', probs.astype(mm_dtype), vh,
                         preferred_element_type=jnp.float32)      # (Bt,S,hs)
        ctxs.append(ctx)

    # One lane-dense, unmasked store of all heads at once.
    out_ref[...] = jnp.concatenate(ctxs, axis=-1).astype(out_ref.dtype)


def magic_self_attention(hidden, attention_mask,
                         wq_pt, bq, wk_pt, bk, wv_pt, bv,
                         *, num_heads=NUM_HEADS, block_b=None,
                         matmul_dtype=jnp.bfloat16, approx_recip=True):
    """hidden: (B, S, H); attention_mask: (B, S) with 1 = attend.
    w*_pt are PyTorch nn.Linear weights in (out, in) layout; b* are (H,).
    matmul_dtype: dtype of the MXU operands (softmax/mask math stays f32)."""
    B, S, H = hidden.shape
    assert H % num_heads == 0
    if block_b is None:
        # Largest batch tile <= 8 that divides B: bigger blocks amortize the
        # per-grid-step pipeline overhead.  (On v7x pick block_b so the grid
        # still has >= 2 steps to shard across both TensorCores.)
        block_b = max(d for d in range(1, min(B, 8) + 1) if B % d == 0)
    assert B % block_b == 0

    mm = jnp.dtype(matmul_dtype)
    x = hidden.astype(mm)
    mask3 = attention_mask.astype(jnp.float32).reshape(B, 1, S)
    # nn.Linear stores weight as (out, in); pre-transpose so kernel does x @ W.
    wq = wq_pt.T.astype(mm)
    wk = wk_pt.T.astype(mm)
    wv = wv_pt.T.astype(mm)
    bq2 = bq.reshape(1, H).astype(jnp.float32)
    bk2 = bk.reshape(1, H).astype(jnp.float32)
    bv2 = bv.reshape(1, H).astype(jnp.float32)

    kernel = functools.partial(_self_attention_kernel,
                               num_heads=num_heads, approx_recip=approx_recip)
    full2d = lambda b: (0, 0)

    return pl.pallas_call(
        kernel,
        out_shape=jax.ShapeDtypeStruct((B, S, H), jnp.float32),
        grid_spec=pltpu.PrefetchScalarGridSpec(
            num_scalar_prefetch=0,
            grid=(B // block_b,),
            in_specs=[
                pl.BlockSpec((block_b, S, H), lambda b: (b, 0, 0)),  # hidden
                pl.BlockSpec((block_b, 1, S), lambda b: (b, 0, 0)),  # mask
                pl.BlockSpec((H, H), full2d),                        # Wq
                pl.BlockSpec((1, H), full2d),                        # bq
                pl.BlockSpec((H, H), full2d),                        # Wk
                pl.BlockSpec((1, H), full2d),                        # bk
                pl.BlockSpec((H, H), full2d),                        # Wv
                pl.BlockSpec((1, H), full2d),                        # bv
            ],
            out_specs=pl.BlockSpec((block_b, S, H), lambda b: (b, 0, 0)),
        ),
        compiler_params=pltpu.CompilerParams(
            dimension_semantics=("parallel",)),
    )(x, mask3, wq, bq2, wk, bk2, wv, bv2)


def _reference(hidden, attention_mask, wq_pt, bq, wk_pt, bk, wv_pt, bv, num_heads):
    B, S, H = hidden.shape
    hs = H // num_heads
    q = hidden @ wq_pt.T + bq
    k = hidden @ wk_pt.T + bk
    v = hidden @ wv_pt.T + bv
    split = lambda x: x.reshape(B, S, num_heads, hs).transpose(0, 2, 1, 3)
    Q, K, V = split(q), split(k), split(v)
    ext = (1.0 - attention_mask)[:, None, None, :] * -10000.0
    scores = (Q @ K.transpose(0, 1, 3, 2)) / math.sqrt(hs) + ext
    probs = jax.nn.softmax(scores, axis=-1)
    ctx = probs @ V
    return ctx.transpose(0, 2, 1, 3).reshape(B, S, H)


if __name__ == "__main__":
    B, S, H = 2, 8, 32
    key = jax.random.PRNGKey(0)
    k_h, k_wq, k_wk, k_wv, k_bq, k_bk, k_bv = jax.random.split(key, 7)

    hidden = jax.random.normal(k_h, (B, S, H), dtype=jnp.float32)
    # Deterministic padding mask: batch 0 fully attended, batch 1 last 3 masked.
    attention_mask = jnp.array(
        [[1] * S, [1] * (S - 3) + [0] * 3], dtype=jnp.float32)

    # PyTorch-layout (out, in) weights, deterministic init.
    wq_pt = 0.1 * jax.random.normal(k_wq, (H, H), dtype=jnp.float32)
    wk_pt = 0.1 * jax.random.normal(k_wk, (H, H), dtype=jnp.float32)
    wv_pt = 0.1 * jax.random.normal(k_wv, (H, H), dtype=jnp.float32)
    bq = 0.1 * jax.random.normal(k_bq, (H,), dtype=jnp.float32)
    bk = 0.1 * jax.random.normal(k_bk, (H,), dtype=jnp.float32)
    bv = 0.1 * jax.random.normal(k_bv, (H,), dtype=jnp.float32)

    ref = _reference(hidden, attention_mask, wq_pt, bq, wk_pt, bk, wv_pt, bv,
                     NUM_HEADS)

    # Run A: tight numerics check (f32 operands, exact reciprocal, grid over B).
    out_f32 = magic_self_attention(
        hidden, attention_mask, wq_pt, bq, wk_pt, bk, wv_pt, bv,
        block_b=1, matmul_dtype=jnp.float32, approx_recip=False)
    out_f32 = jax.block_until_ready(out_f32)
    assert out_f32.shape == (B, S, H)
    assert jnp.allclose(out_f32, ref, rtol=1e-4, atol=1e-4), \
        "f32 kernel mismatch vs reference"

    # Run B: optimized config (bf16 MXU operands, approx reciprocal,
    # whole batch folded into one block).
    out_opt = magic_self_attention(
        hidden, attention_mask, wq_pt, bq, wk_pt, bk, wv_pt, bv)
    out_opt = jax.block_until_ready(out_opt)
    assert out_opt.shape == (B, S, H)
    assert jnp.allclose(out_opt, ref, rtol=2e-2, atol=2e-2), \
        "bf16 kernel mismatch vs reference"

    print("KERNEL_OK")
</pallas_src>

<mosaic_0001>
module attributes {stable_mosaic.version = 11 : i64} {
  func.func @_self_attention_kernel(%arg0: i32, %arg1: memref<1x8x32xf32, #tpu.memory_space<vmem>>, %arg2: memref<1x1x8xf32, #tpu.memory_space<vmem>>, %arg3: memref<32x32xf32, #tpu.memory_space<vmem>>, %arg4: memref<1x32xf32, #tpu.memory_space<vmem>>, %arg5: memref<32x32xf32, #tpu.memory_space<vmem>>, %arg6: memref<1x32xf32, #tpu.memory_space<vmem>>, %arg7: memref<32x32xf32, #tpu.memory_space<vmem>>, %arg8: memref<1x32xf32, #tpu.memory_space<vmem>>, %arg9: memref<1x8x32xf32, #tpu.memory_space<vmem>>) attributes {dimension_semantics = [#tpu.dimension_semantics<parallel>], iteration_bounds = array<i64: 2>, scalar_prefetch = 0 : i64, scratch_operands = 0 : i64, tpu.core_type = #tpu.core_type<tc>, window_params = [{transform_indices = @transform_0, window_bounds = array<i64: 1, 8, 32>}, {transform_indices = @transform_1, window_bounds = array<i64: 1, 1, 8>}, {pipeline_mode = #tpu.pipeline_mode<synchronous>, transform_indices = @transform_2, window_bounds = array<i64: 32, 32>}, {pipeline_mode = #tpu.pipeline_mode<synchronous>, transform_indices = @transform_3, window_bounds = array<i64: 1, 32>}, {pipeline_mode = #tpu.pipeline_mode<synchronous>, transform_indices = @transform_4, window_bounds = array<i64: 32, 32>}, {pipeline_mode = #tpu.pipeline_mode<synchronous>, transform_indices = @transform_5, window_bounds = array<i64: 1, 32>}, {pipeline_mode = #tpu.pipeline_mode<synchronous>, transform_indices = @transform_6, window_bounds = array<i64: 32, 32>}, {pipeline_mode = #tpu.pipeline_mode<synchronous>, transform_indices = @transform_7, window_bounds = array<i64: 1, 32>}, {transform_indices = @transform_8, window_bounds = array<i64: 1, 8, 32>}]} {
    %c0 = arith.constant 0 : index
    %c0_0 = arith.constant 0 : index
    %c0_1 = arith.constant 0 : index
    %0 = vector.load %arg1[%c0, %c0_0, %c0_1] : memref<1x8x32xf32, #tpu.memory_space<vmem>>, vector<1x8x32xf32>
    %c0_2 = arith.constant 0 : index
    %c0_3 = arith.constant 0 : index
    %c0_4 = arith.constant 0 : index
    %1 = vector.load %arg2[%c0_2, %c0_3, %c0_4] : memref<1x1x8xf32, #tpu.memory_space<vmem>>, vector<1x1x8xf32>
    %cst = arith.constant 1.000000e+00 : f32
    %2 = vector.broadcast %cst : f32 to vector<1x1x8xf32>
    %3 = arith.subf %2, %1 : vector<1x1x8xf32>
    %cst_5 = arith.constant -1.000000e+04 : f32
    %4 = vector.broadcast %cst_5 : f32 to vector<1x1x8xf32>
    %5 = arith.mulf %3, %4 : vector<1x1x8xf32>
    %6 = vector.shape_cast %5 : vector<1x1x8xf32> to vector<1x1x8xf32>
    %7 = vector.broadcast %6 : vector<1x1x8xf32> to vector<1x8x8xf32>
    %8 = vector.shape_cast %0 : vector<1x8x32xf32> to vector<8x32xf32>
    %c0_6 = arith.constant 0 : index
    %c0_7 = arith.constant 0 : index
    %9 = vector.load %arg3[%c0_6, %c0_7] : memref<32x32xf32, #tpu.memory_space<vmem>>, vector<32x32xf32>
    %cst_8 = arith.constant dense<0.000000e+00> : vector<8x32xf32>
    %10 = tpu.matmul %8, %9, %cst_8 {dimension_numbers = #tpu.dot_dimension_numbers<[1], [0], [0], [1], [0, 0, 1, 1], [], []>} : vector<8x32xf32>, vector<32x32xf32>, vector<8x32xf32> -> vector<8x32xf32>
    %c0_9 = arith.constant 0 : index
    %c0_10 = arith.constant 0 : index
    %11 = vector.load %arg4[%c0_9, %c0_10] : memref<1x32xf32, #tpu.memory_space<vmem>>, vector<1x32xf32>
    %12 = vector.broadcast %11 : vector<1x32xf32> to vector<8x32xf32>
    %13 = arith.addf %10, %12 : vector<8x32xf32>
    %c0_11 = arith.constant 0 : index
    %c0_12 = arith.constant 0 : index
    %14 = vector.load %arg5[%c0_11, %c0_12] : memref<32x32xf32, #tpu.memory_space<vmem>>, vector<32x32xf32>
    %cst_13 = arith.constant dense<0.000000e+00> : vector<8x32xf32>
    %15 = tpu.matmul %8, %14, %cst_13 {dimension_numbers = #tpu.dot_dimension_numbers<[1], [0], [0], [1], [0, 0, 1, 1], [], []>} : vector<8x32xf32>, vector<32x32xf32>, vector<8x32xf32> -> vector<8x32xf32>
    %c0_14 = arith.constant 0 : index
    %c0_15 = arith.constant 0 : index
    %16 = vector.load %arg6[%c0_14, %c0_15] : memref<1x32xf32, #tpu.memory_space<vmem>>, vector<1x32xf32>
    %17 = vector.broadcast %16 : vector<1x32xf32> to vector<8x32xf32>
    %18 = arith.addf %15, %17 : vector<8x32xf32>
    %c0_16 = arith.constant 0 : index
    %c0_17 = arith.constant 0 : index
    %19 = vector.load %arg7[%c0_16, %c0_17] : memref<32x32xf32, #tpu.memory_space<vmem>>, vector<32x32xf32>
    %cst_18 = arith.constant dense<0.000000e+00> : vector<8x32xf32>
    %20 = tpu.matmul %8, %19, %cst_18 {dimension_numbers = #tpu.dot_dimension_numbers<[1], [0], [0], [1], [0, 0, 1, 1], [], []>} : vector<8x32xf32>, vector<32x32xf32>, vector<8x32xf32> -> vector<8x32xf32>
    %c0_19 = arith.constant 0 : index
    %c0_20 = arith.constant 0 : index
    %21 = vector.load %arg8[%c0_19, %c0_20] : memref<1x32xf32, #tpu.memory_space<vmem>>, vector<1x32xf32>
    %22 = vector.broadcast %21 : vector<1x32xf32> to vector<8x32xf32>
    %23 = arith.addf %20, %22 : vector<8x32xf32>
    %cst_21 = arith.constant 0.353553385 : f32
    %24 = vector.broadcast %cst_21 : f32 to vector<8x32xf32>
    %25 = arith.mulf %13, %24 : vector<8x32xf32>
    %26 = vector.shape_cast %25 : vector<8x32xf32> to vector<1x8x32xf32>
    %27 = vector.shape_cast %18 : vector<8x32xf32> to vector<1x8x32xf32>
    %28 = vector.shape_cast %23 : vector<8x32xf32> to vector<1x8x32xf32>
    %29 = vector.extract_strided_slice %26 {offsets = [0, 0, 0], sizes = [1, 8, 8], strides = [1, 1, 1]} : vector<1x8x32xf32> to vector<1x8x8xf32>
    %30 = vector.extract_strided_slice %27 {offsets = [0, 0, 0], sizes = [1, 8, 8], strides = [1, 1, 1]} : vector<1x8x32xf32> to vector<1x8x8xf32>
    %31 = vector.extract_strided_slice %28 {offsets = [0, 0, 0], sizes = [1, 8, 8], strides = [1, 1, 1]} : vector<1x8x32xf32> to vector<1x8x8xf32>
    "tpu.trace_start"() <{level = 10 : i32, message = "bqd,bkd->bqk"}> : () -> ()
    %cst_22 = arith.constant dense<0.000000e+00> : vector<1x8x8xf32>
    %32 = tpu.matmul %29, %30, %cst_22 {dimension_numbers = #tpu.dot_dimension_numbers<[2], [2], [1], [1], [0, 0, 0, 1, 1, 1], [0], [0]>} : vector<1x8x8xf32>, vector<1x8x8xf32>, vector<1x8x8xf32> -> vector<1x8x8xf32>
    "tpu.trace_stop"() : () -> ()
    %33 = arith.addf %32, %7 : vector<1x8x8xf32>
    %cst_23 = arith.constant dense<0xFF800000> : vector<1x8xf32>
    %34 = vector.multi_reduction <maximumf>, %33, %cst_23 [2] : vector<1x8x8xf32> to vector<1x8xf32>
    %35 = vector.shape_cast %34 : vector<1x8xf32> to vector<1x8x1xf32>
    %36 = vector.broadcast %35 : vector<1x8x1xf32> to vector<1x8x8xf32>
    %37 = arith.subf %33, %36 : vector<1x8x8xf32>
    %38 = math.exp %37 : vector<1x8x8xf32>
    %cst_24 = arith.constant dense<0.000000e+00> : vector<1x8xf32>
    %39 = vector.multi_reduction <add>, %38, %cst_24 [2] : vector<1x8x8xf32> to vector<1x8xf32>
    %40 = vector.shape_cast %39 : vector<1x8xf32> to vector<1x8x1xf32>
    %41 = tpu.reciprocal %40 : vector<1x8x1xf32> -> vector<1x8x1xf32>
    %42 = vector.broadcast %41 : vector<1x8x1xf32> to vector<1x8x8xf32>
    %43 = arith.mulf %38, %42 : vector<1x8x8xf32>
    "tpu.trace_start"() <{level = 10 : i32, message = "bqk,bkd->bqd"}> : () -> ()
    %cst_25 = arith.constant dense<0.000000e+00> : vector<1x8x8xf32>
    %44 = tpu.matmul %43, %31, %cst_25 {dimension_numbers = #tpu.dot_dimension_numbers<[2], [1], [1], [2], [0, 0, 0, 1, 1, 2], [0], [0]>} : vector<1x8x8xf32>, vector<1x8x8xf32>, vector<1x8x8xf32> -> vector<1x8x8xf32>
    "tpu.trace_stop"() : () -> ()
    %45 = vector.extract_strided_slice %26 {offsets = [0, 0, 8], sizes = [1, 8, 8], strides = [1, 1, 1]} : vector<1x8x32xf32> to vector<1x8x8xf32>
    %46 = vector.extract_strided_slice %27 {offsets = [0, 0, 8], sizes = [1, 8, 8], strides = [1, 1, 1]} : vector<1x8x32xf32> to vector<1x8x8xf32>
    %47 = vector.extract_strided_slice %28 {offsets = [0, 0, 8], sizes = [1, 8, 8], strides = [1, 1, 1]} : vector<1x8x32xf32> to vector<1x8x8xf32>
    "tpu.trace_start"() <{level = 10 : i32, message = "bqd,bkd->bqk"}> : () -> ()
    %cst_26 = arith.constant dense<0.000000e+00> : vector<1x8x8xf32>
    %48 = tpu.matmul %45, %46, %cst_26 {dimension_numbers = #tpu.dot_dimension_numbers<[2], [2], [1], [1], [0, 0, 0, 1, 1, 1], [0], [0]>} : vector<1x8x8xf32>, vector<1x8x8xf32>, vector<1x8x8xf32> -> vector<1x8x8xf32>
    "tpu.trace_stop"() : () -> ()
    %49 = arith.addf %48, %7 : vector<1x8x8xf32>
    %cst_27 = arith.constant dense<0xFF800000> : vector<1x8xf32>
    %50 = vector.multi_reduction <maximumf>, %49, %cst_27 [2] : vector<1x8x8xf32> to vector<1x8xf32>
    %51 = vector.shape_cast %50 : vector<1x8xf32> to vector<1x8x1xf32>
    %52 = vector.broadcast %51 : vector<1x8x1xf32> to vector<1x8x8xf32>
    %53 = arith.subf %49, %52 : vector<1x8x8xf32>
    %54 = math.exp %53 : vector<1x8x8xf32>
    %cst_28 = arith.constant dense<0.000000e+00> : vector<1x8xf32>
    %55 = vector.multi_reduction <add>, %54, %cst_28 [2] : vector<1x8x8xf32> to vector<1x8xf32>
    %56 = vector.shape_cast %55 : vector<1x8xf32> to vector<1x8x1xf32>
    %57 = tpu.reciprocal %56 : vector<1x8x1xf32> -> vector<1x8x1xf32>
    %58 = vector.broadcast %57 : vector<1x8x1xf32> to vector<1x8x8xf32>
    %59 = arith.mulf %54, %58 : vector<1x8x8xf32>
    "tpu.trace_start"() <{level = 10 : i32, message = "bqk,bkd->bqd"}> : () -> ()
    %cst_29 = arith.constant dense<0.000000e+00> : vector<1x8x8xf32>
    %60 = tpu.matmul %59, %47, %cst_29 {dimension_numbers = #tpu.dot_dimension_numbers<[2], [1], [1], [2], [0, 0, 0, 1, 1, 2], [0], [0]>} : vector<1x8x8xf32>, vector<1x8x8xf32>, vector<1x8x8xf32> -> vector<1x8x8xf32>
    "tpu.trace_stop"() : () -> ()
    %61 = vector.extract_strided_slice %26 {offsets = [0, 0, 16], sizes = [1, 8, 8], strides = [1, 1, 1]} : vector<1x8x32xf32> to vector<1x8x8xf32>
    %62 = vector.extract_strided_slice %27 {offsets = [0, 0, 16], sizes = [1, 8, 8], strides = [1, 1, 1]} : vector<1x8x32xf32> to vector<1x8x8xf32>
    %63 = vector.extract_strided_slice %28 {offsets = [0, 0, 16], sizes = [1, 8, 8], strides = [1, 1, 1]} : vector<1x8x32xf32> to vector<1x8x8xf32>
    "tpu.trace_start"() <{level = 10 : i32, message = "bqd,bkd->bqk"}> : () -> ()
    %cst_30 = arith.constant dense<0.000000e+00> : vector<1x8x8xf32>
    %64 = tpu.matmul %61, %62, %cst_30 {dimension_numbers = #tpu.dot_dimension_numbers<[2], [2], [1], [1], [0, 0, 0, 1, 1, 1], [0], [0]>} : vector<1x8x8xf32>, vector<1x8x8xf32>, vector<1x8x8xf32> -> vector<1x8x8xf32>
    "tpu.trace_stop"() : () -> ()
    %65 = arith.addf %64, %7 : vector<1x8x8xf32>
    %cst_31 = arith.constant dense<0xFF800000> : vector<1x8xf32>
    %66 = vector.multi_reduction <maximumf>, %65, %cst_31 [2] : vector<1x8x8xf32> to vector<1x8xf32>
    %67 = vector.shape_cast %66 : vector<1x8xf32> to vector<1x8x1xf32>
    %68 = vector.broadcast %67 : vector<1x8x1xf32> to vector<1x8x8xf32>
    %69 = arith.subf %65, %68 : vector<1x8x8xf32>
    %70 = math.exp %69 : vector<1x8x8xf32>
    %cst_32 = arith.constant dense<0.000000e+00> : vector<1x8xf32>
    %71 = vector.multi_reduction <add>, %70, %cst_32 [2] : vector<1x8x8xf32> to vector<1x8xf32>
    %72 = vector.shape_cast %71 : vector<1x8xf32> to vector<1x8x1xf32>
    %73 = tpu.reciprocal %72 : vector<1x8x1xf32> -> vector<1x8x1xf32>
    %74 = vector.broadcast %73 : vector<1x8x1xf32> to vector<1x8x8xf32>
    %75 = arith.mulf %70, %74 : vector<1x8x8xf32>
    "tpu.trace_start"() <{level = 10 : i32, message = "bqk,bkd->bqd"}> : () -> ()
    %cst_33 = arith.constant dense<0.000000e+00> : vector<1x8x8xf32>
    %76 = tpu.matmul %75, %63, %cst_33 {dimension_numbers = #tpu.dot_dimension_numbers<[2], [1], [1], [2], [0, 0, 0, 1, 1, 2], [0], [0]>} : vector<1x8x8xf32>, vector<1x8x8xf32>, vector<1x8x8xf32> -> vector<1x8x8xf32>
    "tpu.trace_stop"() : () -> ()
    %77 = vector.extract_strided_slice %26 {offsets = [0, 0, 24], sizes = [1, 8, 8], strides = [1, 1, 1]} : vector<1x8x32xf32> to vector<1x8x8xf32>
    %78 = vector.extract_strided_slice %27 {offsets = [0, 0, 24], sizes = [1, 8, 8], strides = [1, 1, 1]} : vector<1x8x32xf32> to vector<1x8x8xf32>
    %79 = vector.extract_strided_slice %28 {offsets = [0, 0, 24], sizes = [1, 8, 8], strides = [1, 1, 1]} : vector<1x8x32xf32> to vector<1x8x8xf32>
    "tpu.trace_start"() <{level = 10 : i32, message = "bqd,bkd->bqk"}> : () -> ()
    %cst_34 = arith.constant dense<0.000000e+00> : vector<1x8x8xf32>
    %80 = tpu.matmul %77, %78, %cst_34 {dimension_numbers = #tpu.dot_dimension_numbers<[2], [2], [1], [1], [0, 0, 0, 1, 1, 1], [0], [0]>} : vector<1x8x8xf32>, vector<1x8x8xf32>, vector<1x8x8xf32> -> vector<1x8x8xf32>
    "tpu.trace_stop"() : () -> ()
    %81 = arith.addf %80, %7 : vector<1x8x8xf32>
    %cst_35 = arith.constant dense<0xFF800000> : vector<1x8xf32>
    %82 = vector.multi_reduction <maximumf>, %81, %cst_35 [2] : vector<1x8x8xf32> to vector<1x8xf32>
    %83 = vector.shape_cast %82 : vector<1x8xf32> to vector<1x8x1xf32>
    %84 = vector.broadcast %83 : vector<1x8x1xf32> to vector<1x8x8xf32>
    %85 = arith.subf %81, %84 : vector<1x8x8xf32>
    %86 = math.exp %85 : vector<1x8x8xf32>
    %cst_36 = arith.constant dense<0.000000e+00> : vector<1x8xf32>
    %87 = vector.multi_reduction <add>, %86, %cst_36 [2] : vector<1x8x8xf32> to vector<1x8xf32>
    %88 = vector.shape_cast %87 : vector<1x8xf32> to vector<1x8x1xf32>
    %89 = tpu.reciprocal %88 : vector<1x8x1xf32> -> vector<1x8x1xf32>
    %90 = vector.broadcast %89 : vector<1x8x1xf32> to vector<1x8x8xf32>
    %91 = arith.mulf %86, %90 : vector<1x8x8xf32>
    "tpu.trace_start"() <{level = 10 : i32, message = "bqk,bkd->bqd"}> : () -> ()
    %cst_37 = arith.constant dense<0.000000e+00> : vector<1x8x8xf32>
    %92 = tpu.matmul %91, %79, %cst_37 {dimension_numbers = #tpu.dot_dimension_numbers<[2], [1], [1], [2], [0, 0, 0, 1, 1, 2], [0], [0]>} : vector<1x8x8xf32>, vector<1x8x8xf32>, vector<1x8x8xf32> -> vector<1x8x8xf32>
    "tpu.trace_stop"() : () -> ()
    %93 = tpu.concatenate %44, %60, %76, %92 in 2 : vector<1x8x8xf32>, vector<1x8x8xf32>, vector<1x8x8xf32>, vector<1x8x8xf32> -> vector<1x8x32xf32>
    %c0_38 = arith.constant 0 : index
    %c0_39 = arith.constant 0 : index
    %c0_40 = arith.constant 0 : index
    %94 = vector.load %arg9[%c0_38, %c0_39, %c0_40] : memref<1x8x32xf32, #tpu.memory_space<vmem>>, vector<1x8x32xf32>
    tpu.vector_store %arg9[%c0_38, %c0_39, %c0_40], %93 {strides = array<i32>} : memref<1x8x32xf32, #tpu.memory_space<vmem>>, vector<1x8x32xf32>,
    return
  }
  func.func @transform_0(%arg0: i32) -> (i32, i32, i32) {
    %c0_i32 = arith.constant 0 : i32
    %c0_i32_0 = arith.constant 0 : i32
    %c0_i32_1 = arith.constant 0 : i32
    return %arg0, %c0_i32, %c0_i32_0 : i32, i32, i32
  }
  func.func @transform_1(%arg0: i32) -> (i32, i32, i32) {
    %c0_i32 = arith.constant 0 : i32
    %c0_i32_0 = arith.constant 0 : i32
    %c0_i32_1 = arith.constant 0 : i32
    return %arg0, %c0_i32, %c0_i32_0 : i32, i32, i32
  }
  func.func @transform_2(%arg0: i32) -> (i32, i32) {
    %c0_i32 = arith.constant 0 : i32
    %c0_i32_0 = arith.constant 0 : i32
    %c0_i32_1 = arith.constant 0 : i32
    return %c0_i32, %c0_i32_0 : i32, i32
  }
  func.func @transform_3(%arg0: i32) -> (i32, i32) {
    %c0_i32 = arith.constant 0 : i32
    %c0_i32_0 = arith.constant 0 : i32
    %c0_i32_1 = arith.constant 0 : i32
    return %c0_i32, %c0_i32_0 : i32, i32
  }
  func.func @transform_4(%arg0: i32) -> (i32, i32) {
    %c0_i32 = arith.constant 0 : i32
    %c0_i32_0 = arith.constant 0 : i32
    %c0_i32_1 = arith.constant 0 : i32
    return %c0_i32, %c0_i32_0 : i32, i32
  }
  func.func @transform_5(%arg0: i32) -> (i32, i32) {
    %c0_i32 = arith.constant 0 : i32
    %c0_i32_0 = arith.constant 0 : i32
    %c0_i32_1 = arith.constant 0 : i32
    return %c0_i32, %c0_i32_0 : i32, i32
  }
  func.func @transform_6(%arg0: i32) -> (i32, i32) {
    %c0_i32 = arith.constant 0 : i32
    %c0_i32_0 = arith.constant 0 : i32
    %c0_i32_1 = arith.constant 0 : i32
    return %c0_i32, %c0_i32_0 : i32, i32
  }
  func.func @transform_7(%arg0: i32) -> (i32, i32) {
    %c0_i32 = arith.constant 0 : i32
    %c0_i32_0 = arith.constant 0 : i32
    %c0_i32_1 = arith.constant 0 : i32
    return %c0_i32, %c0_i32_0 : i32, i32
  }
  func.func @transform_8(%arg0: i32) -> (i32, i32, i32) {
    %c0_i32 = arith.constant 0 : i32
    %c0_i32_0 = arith.constant 0 : i32
    %c0_i32_1 = arith.constant 0 : i32
    return %arg0, %c0_i32, %c0_i32_0 : i32, i32, i32
  }
}

</mosaic_0001>

<llo_original>
// kernel: tpu_custom_call.1
$region0: #{tpu_custom_call.1}
  #allocation0 [shape = 'u32[]', space=smem, size = 0x4, offset = 0x4, fixed_abs, tag = 'smem constant byte address 0x4 - core index']
  #allocation1 [shape = 'u32[144,128]{1,0:T(1,128)}', space=vmem, size = 0x12000, scoped, tag = 'internal scratch']
  %s0 = inlined_call_operand.hbm [shape: f32[2,8,32], index: 0, kind: input, shape index: {}]
  %s1 = inlined_call_operand.vmem [shape: f32[2,1,8], index: 1, kind: input, shape index: {}]
  %s2 = inlined_call_operand.hbm [shape: f32[32,32], index: 2, kind: input, shape index: {}]
  %s3 = inlined_call_operand.vmem [shape: f32[1,32], index: 3, kind: input, shape index: {}]
  %s4 = inlined_call_operand.hbm [shape: f32[32,32], index: 4, kind: input, shape index: {}]
  %s5 = inlined_call_operand.vmem [shape: f32[1,32], index: 5, kind: input, shape index: {}]
  %s6 = inlined_call_operand.hbm [shape: f32[32,32], index: 6, kind: input, shape index: {}]
  %s7 = inlined_call_operand.vmem [shape: f32[1,32], index: 7, kind: input, shape index: {}]
  %s8 = inlined_call_operand.hbm [shape: f32[2,8,32], index: 8, kind: output, shape index: {}]
  %s9 = sld [smem:[#allocation0]]
  $region81: #{tpu_custom_call.1} parent=0
    _
  %s11 = ssub.s32 1, %s9
  %s12 = scalar_select 0, %s11, %s9
  $region1: #{tpu_custom_call.1} parent=0
    #allocation2 [shape = 'u8[8192]{0}', space=vmem, size = 0x2000, scoped, tag = 'input window, operand 0']
    #allocation3 [shape = 's32[2]{0}', space=sflag, size = 0x8, scoped, tag = 'scoped memory for tpu_custom_call.1']
    #allocation4 [shape = 's32[2]{0}', space=sflag, size = 0x8, scoped, tag = 'scoped memory for tpu_custom_call.1']
    #allocation5 [shape = 'u8[16384]{0}', space=vmem, size = 0x4000, scoped, tag = 'input window, operand 2, single buffered']
    #allocation6 [shape = 's32[1]{0}', space=sflag, size = 0x4, scoped, tag = 'scoped memory for tpu_custom_call.1']
    #allocation7 [shape = 'u8[16384]{0}', space=vmem, size = 0x4000, scoped, tag = 'input window, operand 4, single buffered']
    #allocation8 [shape = 'u8[16384]{0}', space=vmem, size = 0x4000, scoped, tag = 'input window, operand 6, single buffered']
    #allocation9 [shape = 's32[1]{0}', space=sflag, size = 0x4, scoped, tag = 'scoped memory for tpu_custom_call.1']
    #allocation10 [shape = 'u8[8192]{0}', space=vmem, size = 0x2000, scoped, tag = 'output window, operand 0']
    %13 = vsyncpa [#allocation3], 0
    %s14 = scalar_lea.sflag [#allocation3], 1
    %15 = vsyncpa %s14, 0
    %16 = vsyncpa [#allocation6], 0
    %17 = vsyncpa [#allocation9], 0
    %18 = vsyncpa [#allocation4], 0
    %s19 = scalar_lea.sflag [#allocation4], 1
    %20 = vsyncpa %s19, 0
    loop: start=0, step=1, limit=4
    $region2: #{tpu_custom_call.1} parent=1 // loop_pre_header
      _
    $region3: #{tpu_custom_call.1} parent=1 // loop_header
      %s22 = sphi 0, %s26
      %p23 = scmp.ge.s32.totalorder %s22, 4
      %s32 = sphi 0, %s34
      %s35 = sphi 0, %s32
      %s36 = sphi 0, %s35
      %s52 = sphi 0, %s36
      %s58 = sphi 0, %s60
      %s61 = sphi 0, %s58
      %s62 = sphi 0, %s61
      %s78 = sphi 0, %s62
      %s82 = sphi 0, %s82
      %s84 = sphi 0, %s82
      %s85 = sphi 0, %s84
      %s99 = sphi 0, %s85
      %s103 = sphi 0, %s103
      %s105 = sphi 0, %s103
      %s106 = sphi 0, %s105
      %s120 = sphi 0, %s106
      %s124 = sphi 0, %s124
      %s126 = sphi 0, %s124
      %s127 = sphi 0, %s126
      %s141 = sphi 0, %s127
      %s145 = sphi 0, %s145
      %s147 = sphi 0, %s145
      %s148 = sphi 0, %s147
      %s162 = sphi 0, %s148
      %s166 = sphi 0, %s166
      %s168 = sphi 0, %s166
      %s169 = sphi 0, %s168
      %s183 = sphi 0, %s169
      %s187 = sphi 0, %s187
      %s189 = sphi 0, %s187
      %s190 = sphi 0, %s189
      %s204 = sphi 0, %s190
      %s210 = sphi 0, %s212
      %s213 = sphi 0, %s210
      %s214 = sphi 0, %s213
      %s230 = sphi 0, %s214
    $region4: #{tpu_custom_call.1} parent=1 // loop_header_branch
      %25 = sbr.rel (%p23) target = $region8
    $region5: #{tpu_custom_call.1} parent=1 // loop_body
      %s27 = ssub.s32 %s22, 1
      %s28 = ssub.s32 %s22, 2
      %s29 = sadd.s32 %s22, 1
      %s30 = ssub.s32 %s22, %s29
      %p31 = scmp.eq.s32.totalorder %s30, 0
      %s33 = sadd.s32 %s32, 1
      %s34 = scalar_select %p31, %s32, %s33
      %p37 = pneg %p31
      %p38 = scmp.eq.s32.totalorder %s22, 1
      %p39 = por %p37, %p38
      %p40 = scmp.ne.s32.totalorder %s32, %s35
      %p41 = scmp.eq.s32.totalorder %s22, 0
      %p42 = por %p40, %p41
      %p43 = scmp.ne.s32.totalorder %s32, %s35
      %p44 = scmp.eq.s32.totalorder %s27, 1
      %p45 = por %p43, %p44
      %p46 = scmp.ne.s32.totalorder %s35, %s36
      %p47 = scmp.eq.s32.totalorder %s27, 0
      %p48 = por %p46, %p47
      %p49 = scmp.ne.s32.totalorder %s35, %s36
      %p50 = scmp.eq.s32.totalorder %s28, 1
      %p51 = por %p49, %p50
      %p53 = scmp.ne.s32.totalorder %s36, %s52
      %p54 = scmp.eq.s32.totalorder %s28, 0
      %p55 = por %p53, %p54
      %s56 = ssub.s32 %s22, %s29
      %p57 = scmp.eq.s32.totalorder %s56, 0
      %s59 = sadd.s32 %s58, 1
      %s60 = scalar_select %p57, %s58, %s59
      %p63 = pneg %p57
      %p64 = scmp.eq.s32.totalorder %s22, 1
      %p65 = por %p63, %p64
      %p66 = scmp.ne.s32.totalorder %s58, %s61
      %p67 = scmp.eq.s32.totalorder %s22, 0
      %p68 = por %p66, %p67
      %p69 = scmp.ne.s32.totalorder %s58, %s61
      %p70 = scmp.eq.s32.totalorder %s27, 1
      %p71 = por %p69, %p70
      %p72 = scmp.ne.s32.totalorder %s61, %s62
      %p73 = scmp.eq.s32.totalorder %s27, 0
      %p74 = por %p72, %p73
      %p75 = scmp.ne.s32.totalorder %s61, %s62
      %p76 = scmp.eq.s32.totalorder %s28, 1
      %p77 = por %p75, %p76
      %p79 = scmp.ne.s32.totalorder %s62, %s78
      %p80 = scmp.eq.s32.totalorder %s28, 0
      %p81 = por %p79, %p80
      %s83 = sadd.s32 %s82, 1
      %p86 = scmp.eq.s32.totalorder %s22, 1
      %p87 = scmp.ne.s32.totalorder %s82, %s84
      %p88 = scmp.eq.s32.totalorder %s22, 0
      %p89 = por %p87, %p88
      %p90 = scmp.ne.s32.totalorder %s82, %s84
      %p91 = scmp.eq.s32.totalorder %s27, 1
      %p92 = por %p90, %p91
      %p93 = scmp.ne.s32.totalorder %s84, %s85
      %p94 = scmp.eq.s32.totalorder %s27, 0
      %p95 = por %p93, %p94
      %p96 = scmp.ne.s32.totalorder %s84, %s85
      %p97 = scmp.eq.s32.totalorder %s28, 1
      %p98 = por %p96, %p97
      %p100 = scmp.ne.s32.totalorder %s85, %s99
      %p101 = scmp.eq.s32.totalorder %s28, 0
      %p102 = por %p100, %p101
      %s104 = sadd.s32 %s103, 1
      %p107 = scmp.eq.s32.totalorder %s22, 1
      %p108 = scmp.ne.s32.totalorder %s103, %s105
      %p109 = scmp.eq.s32.totalorder %s22, 0
      %p110 = por %p108, %p109
      %p111 = scmp.ne.s32.totalorder %s103, %s105
      %p112 = scmp.eq.s32.totalorder %s27, 1
      %p113 = por %p111, %p112
      %p114 = scmp.ne.s32.totalorder %s105, %s106
      %p115 = scmp.eq.s32.totalorder %s27, 0
      %p116 = por %p114, %p115
      %p117 = scmp.ne.s32.totalorder %s105, %s106
      %p118 = scmp.eq.s32.totalorder %s28, 1
      %p119 = por %p117, %p118
      %p121 = scmp.ne.s32.totalorder %s106, %s120
      %p122 = scmp.eq.s32.totalorder %s28, 0
      %p123 = por %p121, %p122
      %s125 = sadd.s32 %s124, 1
      %p128 = scmp.eq.s32.totalorder %s22, 1
      %p129 = scmp.ne.s32.totalorder %s124, %s126
      %p130 = scmp.eq.s32.totalorder %s22, 0
      %p131 = por %p129, %p130
      %p132 = scmp.ne.s32.totalorder %s124, %s126
      %p133 = scmp.eq.s32.totalorder %s27, 1
      %p134 = por %p132, %p133
      %p135 = scmp.ne.s32.totalorder %s126, %s127
      %p136 = scmp.eq.s32.totalorder %s27, 0
      %p137 = por %p135, %p136
      %p138 = scmp.ne.s32.totalorder %s126, %s127
      %p139 = scmp.eq.s32.totalorder %s28, 1
      %p140 = por %p138, %p139
      %p142 = scmp.ne.s32.totalorder %s127, %s141
      %p143 = scmp.eq.s32.totalorder %s28, 0
      %p144 = por %p142, %p143
      %s146 = sadd.s32 %s145, 1
      %p149 = scmp.eq.s32.totalorder %s22, 1
      %p150 = scmp.ne.s32.totalorder %s145, %s147
      %p151 = scmp.eq.s32.totalorder %s22, 0
      %p152 = por %p150, %p151
      %p153 = scmp.ne.s32.totalorder %s145, %s147
      %p154 = scmp.eq.s32.totalorder %s27, 1
      %p155 = por %p153, %p154
      %p156 = scmp.ne.s32.totalorder %s147, %s148
      %p157 = scmp.eq.s32.totalorder %s27, 0
      %p158 = por %p156, %p157
      %p159 = scmp.ne.s32.totalorder %s147, %s148
      %p160 = scmp.eq.s32.totalorder %s28, 1
      %p161 = por %p159, %p160
      %p163 = scmp.ne.s32.totalorder %s148, %s162
      %p164 = scmp.eq.s32.totalorder %s28, 0
      %p165 = por %p163, %p164
      %s167 = sadd.s32 %s166, 1
      %p170 = scmp.eq.s32.totalorder %s22, 1
      %p171 = scmp.ne.s32.totalorder %s166, %s168
      %p172 = scmp.eq.s32.totalorder %s22, 0
      %p173 = por %p171, %p172
      %p174 = scmp.ne.s32.totalorder %s166, %s168
      %p175 = scmp.eq.s32.totalorder %s27, 1
      %p176 = por %p174, %p175
      %p177 = scmp.ne.s32.totalorder %s168, %s169
      %p178 = scmp.eq.s32.totalorder %s27, 0
      %p179 = por %p177, %p178
      %p180 = scmp.ne.s32.totalorder %s168, %s169
      %p181 = scmp.eq.s32.totalorder %s28, 1
      %p182 = por %p180, %p181
      %p184 = scmp.ne.s32.totalorder %s169, %s183
      %p185 = scmp.eq.s32.totalorder %s28, 0
      %p186 = por %p184, %p185
      %s188 = sadd.s32 %s187, 1
      %p191 = scmp.eq.s32.totalorder %s22, 1
      %p192 = scmp.ne.s32.totalorder %s187, %s189
      %p193 = scmp.eq.s32.totalorder %s22, 0
      %p194 = por %p192, %p193
      %p195 = scmp.ne.s32.totalorder %s187, %s189
      %p196 = scmp.eq.s32.totalorder %s27, 1
      %p197 = por %p195, %p196
      %p198 = scmp.ne.s32.totalorder %s189, %s190
      %p199 = scmp.eq.s32.totalorder %s27, 0
      %p200 = por %p198, %p199
      %p201 = scmp.ne.s32.totalorder %s189, %s190
      %p202 = scmp.eq.s32.totalorder %s28, 1
      %p203 = por %p201, %p202
      %p205 = scmp.ne.s32.totalorder %s190, %s204
      %p206 = scmp.eq.s32.totalorder %s28, 0
      %p207 = por %p205, %p206
      %s208 = ssub.s32 %s22, %s29
      %p209 = scmp.eq.s32.totalorder %s208, 0
      %s211 = sadd.s32 %s210, 1
      %s212 = scalar_select %p209, %s210, %s211
      %p215 = pneg %p209
      %p216 = scmp.eq.s32.totalorder %s22, 1
      %p217 = por %p215, %p216
      %p218 = scmp.ne.s32.totalorder %s210, %s213
      %p219 = scmp.eq.s32.totalorder %s22, 0
      %p220 = por %p218, %p219
      %p221 = scmp.ne.s32.totalorder %s210, %s213
      %p222 = scmp.eq.s32.totalorder %s27, 1
      %p223 = por %p221, %p222
      %p224 = scmp.ne.s32.totalorder %s213, %s214
      %p225 = scmp.eq.s32.totalorder %s27, 0
      %p226 = por %p224, %p225
      %p227 = scmp.ne.s32.totalorder %s213, %s214
      %p228 = scmp.eq.s32.totalorder %s28, 1
      %p229 = por %p227, %p228
      %p231 = scmp.ne.s32.totalorder %s214, %s230
      %p232 = scmp.eq.s32.totalorder %s28, 0
      %p233 = por %p231, %p232
      %p234 = scmp.le.s32.totalorder 1, %s22
      %p235 = scmp.lt.s32.totalorder %s22, 3
      %p236 = pnand %p234, %p235
      %p237 = pneg %p236
      // Predicated region
      $region9: #{tpu_custom_call.1} parent=5 // pred_check
        _
      $region10: #{tpu_custom_call.1} parent=5 // pred_check_branch
        %239 = sbr.rel (%p236) target = $region12
      $region11: #{tpu_custom_call.1} parent=5 // pred_region
        %s240 = ssub.s32 %s22, 1
        // Predicated region
        $region13: #{tpu_custom_call.1} parent=11 // pred_check
          %p241 = pneg %p95
        $region14: #{tpu_custom_call.1} parent=11 // pred_check_branch
          %243 = sbr.rel (%p241) target = $region16
        $region15: #{tpu_custom_call.1} parent=11 // pred_region
          %s245 = ssub.s32 512, 512
          %246 = vsyncadd [#allocation6], %s245
          %s247 = sshll.u32 [#allocation5], 4
          %s248 = int_to_ptr.vmem [resolvable:$true] %s247
          %253 = dma.hbm_to_vmem [thread:$0]  %s2, 512, %s248, [#allocation6], 128, 128, 8
        $region16: #{tpu_custom_call.1} parent=11 // pred_fallthru
          _
        // Predicated region
        $region17: #{tpu_custom_call.1} parent=11 // pred_check
          %p254 = pneg %p116
        $region18: #{tpu_custom_call.1} parent=11 // pred_check_branch
          %256 = sbr.rel (%p254) target = $region20
        $region19: #{tpu_custom_call.1} parent=11 // pred_region
          _
        $region20: #{tpu_custom_call.1} parent=11 // pred_fallthru
          _
        // Predicated region
        $region21: #{tpu_custom_call.1} parent=11 // pred_check
          %p257 = pneg %p137
        $region22: #{tpu_custom_call.1} parent=11 // pred_check_branch
          %259 = sbr.rel (%p257) target = $region24
        $region23: #{tpu_custom_call.1} parent=11 // pred_region
          %s261 = ssub.s32 512, 512
          %262 = vsyncadd [#allocation6], %s261
          %s263 = sshll.u32 [#allocation7], 4
          %s264 = int_to_ptr.vmem [resolvable:$true] %s263
          %269 = dma.hbm_to_vmem [thread:$0]  %s4, 512, %s264, [#allocation6], 128, 128, 8
        $region24: #{tpu_custom_call.1} parent=11 // pred_fallthru
          _
        // Predicated region
        $region25: #{tpu_custom_call.1} parent=11 // pred_check
          %p270 = pneg %p158
        $region26: #{tpu_custom_call.1} parent=11 // pred_check_branch
          %272 = sbr.rel (%p270) target = $region28
        $region27: #{tpu_custom_call.1} parent=11 // pred_region
          _
        $region28: #{tpu_custom_call.1} parent=11 // pred_fallthru
          _
        // Predicated region
        $region29: #{tpu_custom_call.1} parent=11 // pred_check
          %p273 = pneg %p179
        $region30: #{tpu_custom_call.1} parent=11 // pred_check_branch
          %275 = sbr.rel (%p273) target = $region32
        $region31: #{tpu_custom_call.1} parent=11 // pred_region
          %s277 = ssub.s32 512, 512
          %278 = vsyncadd [#allocation9], %s277
          %s279 = sshll.u32 [#allocation8], 4
          %s280 = int_to_ptr.vmem [resolvable:$true] %s279
          %285 = dma.hbm_to_vmem [thread:$0]  %s6, 512, %s280, [#allocation9], 128, 128, 8
        $region32: #{tpu_custom_call.1} parent=11 // pred_fallthru
          _
        // Predicated region
        $region33: #{tpu_custom_call.1} parent=11 // pred_check
          %p286 = pneg %p200
        $region34: #{tpu_custom_call.1} parent=11 // pred_check_branch
          %288 = sbr.rel (%p286) target = $region36
        $region35: #{tpu_custom_call.1} parent=11 // pred_region
          _
        $region36: #{tpu_custom_call.1} parent=11 // pred_fallthru
          _
      $region12: #{tpu_custom_call.1} parent=5 // pred_fallthru
        _
      %p289 = scmp.lt.s32.totalorder %s22, 2
      // Predicated region
      $region37: #{tpu_custom_call.1} parent=5 // pred_check
        %p290 = pneg %p289
      $region38: #{tpu_custom_call.1} parent=5 // pred_check_branch
        %292 = sbr.rel (%p290) target = $region40
      $region39: #{tpu_custom_call.1} parent=5 // pred_region
        // Predicated region
        $region41: #{tpu_custom_call.1} parent=39 // pred_check
          %p293 = pneg %p42
        $region42: #{tpu_custom_call.1} parent=39 // pred_check_branch
          %295 = sbr.rel (%p293) target = $region44
        $region43: #{tpu_custom_call.1} parent=39 // pred_region
          %s296 = sand.u32 %s32, 1
          %s297 = scalar_lea.sflag [#allocation3], %s296
          %s298 = sand.u32 %s32, 1
          %s299 = smul.addr %s298, 8
          %s300 = scalar_lea.vmem [#allocation2], %s299
          %s302 = ssub.s32 128, 128
          %303 = vsyncadd %s297, %s302
          %s304 = smul.addr %s22, 128
          %s305 = scalar_lea.hbm %s0, %s304
          %s307 = sshll.u32 %s300, 4
          %s308 = int_to_ptr.vmem [resolvable:$true] %s307
          %310 = dma.hbm_to_vmem [thread:$0]  %s305, 128, %s308, %s297
        $region44: #{tpu_custom_call.1} parent=39 // pred_fallthru
          _
        // Predicated region
        $region45: #{tpu_custom_call.1} parent=39 // pred_check
          %p311 = pneg %p68
        $region46: #{tpu_custom_call.1} parent=39 // pred_check_branch
          %313 = sbr.rel (%p311) target = $region48
        $region47: #{tpu_custom_call.1} parent=39 // pred_region
          %p314 = scmp.lt.s32.totalorder %s22, 1
          %s315 = scalar_select %p314, %s22, 1
          %s316 = scalar_lea.vmem %s1, %s315
        $region48: #{tpu_custom_call.1} parent=39 // pred_fallthru
          _
      $region40: #{tpu_custom_call.1} parent=5 // pred_fallthru
        _
      %p317 = scmp.le.s32.totalorder 1, %s22
      %p318 = scmp.lt.s32.totalorder %s22, 3
      %p319 = pnand %p317, %p318
      %p320 = pneg %p319
      // Predicated region
      $region49: #{tpu_custom_call.1} parent=5 // pred_check
        _
      $region50: #{tpu_custom_call.1} parent=5 // pred_check_branch
        %322 = sbr.rel (%p319) target = $region52
      $region51: #{tpu_custom_call.1} parent=5 // pred_region
        %s323 = ssub.s32 %s22, 1
        %s324 = sand.u32 %s35, 1
        %s325 = scalar_lea.sflag [#allocation3], %s324
        %s326 = sand.u32 %s35, 1
        %s327 = smul.addr %s326, 8
        %s328 = scalar_lea.vmem [#allocation2], %s327
        // Predicated region
        $region53: #{tpu_custom_call.1} parent=51 // pred_check
          %p329 = pneg %p48
        $region54: #{tpu_custom_call.1} parent=51 // pred_check_branch
          %331 = sbr.rel (%p329) target = $region56
        $region55: #{tpu_custom_call.1} parent=51 // pred_region
          %332 = dma.done %s325, 128
        $region56: #{tpu_custom_call.1} parent=51 // pred_fallthru
          _
        // Predicated region
        $region57: #{tpu_custom_call.1} parent=51 // pred_check
          %p333 = pneg %p95
        $region58: #{tpu_custom_call.1} parent=51 // pred_check_branch
          %335 = sbr.rel (%p333) target = $region60
        $region59: #{tpu_custom_call.1} parent=51 // pred_region
          %336 = dma.done [#allocation6], 512
        $region60: #{tpu_custom_call.1} parent=51 // pred_fallthru
          _
        // Predicated region
        $region61: #{tpu_custom_call.1} parent=51 // pred_check
          %p337 = pneg %p137
        $region62: #{tpu_custom_call.1} parent=51 // pred_check_branch
          %339 = sbr.rel (%p337) target = $region64
        $region63: #{tpu_custom_call.1} parent=51 // pred_region
          %340 = dma.done [#allocation6], 512
        $region64: #{tpu_custom_call.1} parent=51 // pred_fallthru
          _
        // Predicated region
        $region65: #{tpu_custom_call.1} parent=51 // pred_check
          %p341 = pneg %p179
        $region66: #{tpu_custom_call.1} parent=51 // pred_check_branch
          %343 = sbr.rel (%p341) target = $region68
        $region67: #{tpu_custom_call.1} parent=51 // pred_region
          %344 = dma.done [#allocation9], 512
        $region68: #{tpu_custom_call.1} parent=51 // pred_fallthru
          _
        %s345 = sand.u32 %s35, 1
        %s346 = scalar_lea.sflag [#allocation3], %s345
        %s347 = sand.u32 %s35, 1
        %s348 = smul.addr %s347, 8
        %s349 = scalar_lea.vmem [#allocation2], %s348
        %p350 = pneg %p48
        %p351 = pneg %p45
        %p352 = scmp.lt.s32.totalorder %s27, 1
        %s353 = scalar_select %p352, %s27, 1
        %s354 = scalar_lea.vmem %s1, %s353
        %p355 = pneg %p74
        %p356 = pneg %p71
        %p357 = pneg %p95
        %p358 = pneg %p92
        %p359 = pneg %p116
        %p360 = pneg %p113
        %p361 = pneg %p137
        %p362 = pneg %p134
        %p363 = pneg %p158
        %p364 = pneg %p155
        %p365 = pneg %p179
        %p366 = pneg %p176
        %p367 = pneg %p200
        %p368 = pneg %p197
        %p369 = pneg %p226
        %p370 = pneg %p223
        %s371 = sand.u32 %s213, 1
        %s372 = scalar_lea.sflag [#allocation4], %s371
        %s373 = sand.u32 %s213, 1
        %s374 = smul.addr %s373, 8
        %s375 = scalar_lea.vmem [#allocation10], %s374
        %p376 = scmp.lt.s32.totalorder %s27, 1
        %s377 = scalar_select %p376, %s27, 1
        %s378 = scalar_lea.vmem %s1, %s377
        %v379 = vld [vmem:[%s328] sm:$0xff]
        %v380 = vld [vmem:[%s378] sm:$0x1]
        %v381 = vsub.f32 1.0, %v380
        %v382 = vmul.f32 %v381, -10000.0
        %v384 = vlaneseq
        %v385 = vshrl.u32 %v384, 7
        %v386 = vsub.s32 0, %v385
        %v387 = vrot.slane %v382, %v386
        %v389 = vld [vmem:[#allocation5] sm:$0xff]
        %v390 = vld [vmem:[#allocation5 + $0x8] sm:$0xff]
        %v391 = vld [vmem:[#allocation5 + $0x10] sm:$0xff]
        %v392 = vld [vmem:[#allocation5 + $0x18] sm:$0xff]
        %v393 = vld [vmem:[%s3] sm:$0x1]
        %v395 = vlaneseq
        %v396 = vshrl.u32 %v395, 7
        %v397 = vsub.s32 0, %v396
        %v398 = vrot.slane %v393, %v397
        %vm400 = vcmask 261120
        %v402 = vsel %vm400, %v379, 0
        %404 = vmatprep.subr.mxu0 0.0
        %405 = vmatpush1.msra.mxu0 %v389
        %406 = vmatprep.subr.mxu0 0.0
        %407 = vmatpush1.msra.mxu0 %v390
        %408 = vmatprep.subr.mxu0 0.0
        %409 = vmatpush1.msra.mxu0 %v391
        %410 = vmatprep.subr.mxu0 0.0
        %411 = vmatpush1.msra.mxu0 %v392
        %412 = vmatprep.subr.mxu0 0.0
        %413 = vmatpush1.msra.mxu0 0.0
        %414 = vmatprep.subr.mxu0 0.0
        %415 = vmatpush1.msra.mxu0 0.0
        %416 = vmatprep.subr.mxu0 0.0
        %417 = vmatpush1.msra.mxu0 0.0
        %418 = vmatprep.subr.mxu0 0.0
        %419 = vmatpush1.msra.mxu0 0.0
        %420 = vmatprep.subr.mxu0 0.0
        %421 = vmatpush1.msra.mxu0 0.0
        %422 = vmatprep.subr.mxu0 0.0
        %423 = vmatpush1.msra.mxu0 0.0
        %424 = vmatprep.subr.mxu0 0.0
        %425 = vmatpush1.msra.mxu0 0.0
        %426 = vmatprep.subr.mxu0 0.0
        %427 = vmatpush1.msra.mxu0 0.0
        %428 = vmatprep.subr.mxu0 0.0
        %429 = vmatpush1.msra.mxu0 0.0
        %430 = vmatprep.subr.mxu0 0.0
        %431 = vmatpush1.msra.mxu0 0.0
        %432 = vmatprep.subr.mxu0 0.0
        %433 = vmatpush1.msra.mxu0 0.0
        %434 = vmatprep.subr.mxu0 0.0
        %435 = vmatpush1.msra.mxu0 0.0
        %436 = vmatprep.subr.mxu0 0.0
        %437 = vmatpush1.msra.mxu0 0.0
        %438 = vmatprep.subr.mxu0 0.0
        %439 = vmatpush1.msra.mxu0 0.0
        %440 = vmatprep.subr.mxu0 0.0
        %441 = vmatpush1.msra.mxu0 0.0
        %442 = vmatprep.subr.mxu0 0.0
        %443 = vmatpush1.msra.mxu0 0.0
        %444 = vmatprep.subr.mxu0 0.0
        %445 = vmatpush1.msra.mxu0 0.0
        %446 = vmatprep.subr.mxu0 0.0
        %447 = vmatpush1.msra.mxu0 0.0
        %448 = vmatprep.subr.mxu0 0.0
        %449 = vmatpush1.msra.mxu0 0.0
        %450 = vmatprep.subr.mxu0 0.0
        %451 = vmatpush1.msra.mxu0 0.0
        %452 = vmatprep.subr.mxu0 0.0
        %453 = vmatpush1.msra.mxu0 0.0
        %454 = vmatprep.subr.mxu0 0.0
        %455 = vmatpush1.msra.mxu0 0.0
        %456 = vmatprep.subr.mxu0 0.0
        %457 = vmatpush1.msra.mxu0 0.0
        %458 = vmatprep.subr.mxu0 0.0
        %459 = vmatpush1.msra.mxu0 0.0
        %460 = vmatprep.subr.mxu0 0.0
        %461 = vmatpush1.msra.mxu0 0.0
        %462 = vmatprep.subr.mxu0 0.0
        %463 = vmatpush1.msra.mxu0 0.0
        %464 = vmatprep.subr.mxu0 0.0
        %465 = vmatpush1.msra.mxu0 0.0
        %466 = vmatprep.subr.mxu0 0.0
        %467 = vmatpush1.msra.mxu0 0.0
        %468 = vmatprep.mubr.f32.mxu0 0.0
        %469 = vmatmul.mubr.f32.gmra.mrb[0].mxu0 %v402
        %v470 = vpop.f32.mrb[0].mxu0
        %v471 = vadd.f32 %v398, %v470
        %v472 = vpop.f32.mrb[0].mxu0
        %473 = vdwg.mxu0
        %v474 = vld [vmem:[#allocation7] sm:$0xff]
        %v475 = vld [vmem:[#allocation7 + $0x8] sm:$0xff]
        %v476 = vld [vmem:[#allocation7 + $0x10] sm:$0xff]
        %v477 = vld [vmem:[#allocation7 + $0x18] sm:$0xff]
        %v478 = vld [vmem:[%s5] sm:$0x1]
        %v480 = vlaneseq
        %v481 = vshrl.u32 %v480, 7
        %v482 = vsub.s32 0, %v481
        %v483 = vrot.slane %v478, %v482
        %485 = vmatprep.subr.mxu0 0.0
        %486 = vmatpush1.msra.mxu0 %v474
        %487 = vmatprep.subr.mxu0 0.0
        %488 = vmatpush1.msra.mxu0 %v475
        %489 = vmatprep.subr.mxu0 0.0
        %490 = vmatpush1.msra.mxu0 %v476
        %491 = vmatprep.subr.mxu0 0.0
        %492 = vmatpush1.msra.mxu0 %v477
        %493 = vmatprep.subr.mxu0 0.0
        %494 = vmatpush1.msra.mxu0 0.0
        %495 = vmatprep.subr.mxu0 0.0
        %496 = vmatpush1.msra.mxu0 0.0
        %497 = vmatprep.subr.mxu0 0.0
        %498 = vmatpush1.msra.mxu0 0.0
        %499 = vmatprep.subr.mxu0 0.0
        %500 = vmatpush1.msra.mxu0 0.0
        %501 = vmatprep.subr.mxu0 0.0
        %502 = vmatpush1.msra.mxu0 0.0
        %503 = vmatprep.subr.mxu0 0.0
        %504 = vmatpush1.msra.mxu0 0.0
        %505 = vmatprep.subr.mxu0 0.0
        %506 = vmatpush1.msra.mxu0 0.0
        %507 = vmatprep.subr.mxu0 0.0
        %508 = vmatpush1.msra.mxu0 0.0
        %509 = vmatprep.subr.mxu0 0.0
        %510 = vmatpush1.msra.mxu0 0.0
        %511 = vmatprep.subr.mxu0 0.0
        %512 = vmatpush1.msra.mxu0 0.0
        %513 = vmatprep.subr.mxu0 0.0
        %514 = vmatpush1.msra.mxu0 0.0
        %515 = vmatprep.subr.mxu0 0.0
        %516 = vmatpush1.msra.mxu0 0.0
        %517 = vmatprep.subr.mxu0 0.0
        %518 = vmatpush1.msra.mxu0 0.0
        %519 = vmatprep.subr.mxu0 0.0
        %520 = vmatpush1.msra.mxu0 0.0
        %521 = vmatprep.subr.mxu0 0.0
        %522 = vmatpush1.msra.mxu0 0.0
        %523 = vmatprep.subr.mxu0 0.0
        %524 = vmatpush1.msra.mxu0 0.0
        %525 = vmatprep.subr.mxu0 0.0
        %526 = vmatpush1.msra.mxu0 0.0
        %527 = vmatprep.subr.mxu0 0.0
        %528 = vmatpush1.msra.mxu0 0.0
        %529 = vmatprep.subr.mxu0 0.0
        %530 = vmatpush1.msra.mxu0 0.0
        %531 = vmatprep.subr.mxu0 0.0
        %532 = vmatpush1.msra.mxu0 0.0
        %533 = vmatprep.subr.mxu0 0.0
        %534 = vmatpush1.msra.mxu0 0.0
        %535 = vmatprep.subr.mxu0 0.0
        %536 = vmatpush1.msra.mxu0 0.0
        %537 = vmatprep.subr.mxu0 0.0
        %538 = vmatpush1.msra.mxu0 0.0
        %539 = vmatprep.subr.mxu0 0.0
        %540 = vmatpush1.msra.mxu0 0.0
        %541 = vmatprep.subr.mxu0 0.0
        %542 = vmatpush1.msra.mxu0 0.0
        %543 = vmatprep.subr.mxu0 0.0
        %544 = vmatpush1.msra.mxu0 0.0
        %545 = vmatprep.subr.mxu0 0.0
        %546 = vmatpush1.msra.mxu0 0.0
        %547 = vmatprep.subr.mxu0 0.0
        %548 = vmatpush1.msra.mxu0 0.0
        %549 = vmatprep.mubr.f32.mxu0 0.0
        %550 = vmatmul.mubr.f32.gmra.mrb[0].mxu0 %v402
        %v551 = vpop.f32.mrb[0].mxu0
        %v552 = vadd.f32 %v483, %v551
        %v553 = vpop.f32.mrb[0].mxu0
        %554 = vdwg.mxu0
        %v555 = vld [vmem:[#allocation8] sm:$0xff]
        %v556 = vld [vmem:[#allocation8 + $0x8] sm:$0xff]
        %v557 = vld [vmem:[#allocation8 + $0x10] sm:$0xff]
        %v558 = vld [vmem:[#allocation8 + $0x18] sm:$0xff]
        %v559 = vld [vmem:[%s7] sm:$0x1]
        %v561 = vlaneseq
        %v562 = vshrl.u32 %v561, 7
        %v563 = vsub.s32 0, %v562
        %v564 = vrot.slane %v559, %v563
        %566 = vmatprep.subr.mxu0 0.0
        %567 = vmatpush1.msra.mxu0 %v555
        %568 = vmatprep.subr.mxu0 0.0
        %569 = vmatpush1.msra.mxu0 %v556
        %570 = vmatprep.subr.mxu0 0.0
        %571 = vmatpush1.msra.mxu0 %v557
        %572 = vmatprep.subr.mxu0 0.0
        %573 = vmatpush1.msra.mxu0 %v558
        %574 = vmatprep.subr.mxu0 0.0
        %575 = vmatpush1.msra.mxu0 0.0
        %576 = vmatprep.subr.mxu0 0.0
        %577 = vmatpush1.msra.mxu0 0.0
        %578 = vmatprep.subr.mxu0 0.0
        %579 = vmatpush1.msra.mxu0 0.0
        %580 = vmatprep.subr.mxu0 0.0
        %581 = vmatpush1.msra.mxu0 0.0
        %582 = vmatprep.subr.mxu0 0.0
        %583 = vmatpush1.msra.mxu0 0.0
        %584 = vmatprep.subr.mxu0 0.0
        %585 = vmatpush1.msra.mxu0 0.0
        %586 = vmatprep.subr.mxu0 0.0
        %587 = vmatpush1.msra.mxu0 0.0
        %588 = vmatprep.subr.mxu0 0.0
        %589 = vmatpush1.msra.mxu0 0.0
        %590 = vmatprep.subr.mxu0 0.0
        %591 = vmatpush1.msra.mxu0 0.0
        %592 = vmatprep.subr.mxu0 0.0
        %593 = vmatpush1.msra.mxu0 0.0
        %594 = vmatprep.subr.mxu0 0.0
        %595 = vmatpush1.msra.mxu0 0.0
        %596 = vmatprep.subr.mxu0 0.0
        %597 = vmatpush1.msra.mxu0 0.0
        %598 = vmatprep.subr.mxu0 0.0
        %599 = vmatpush1.msra.mxu0 0.0
        %600 = vmatprep.subr.mxu0 0.0
        %601 = vmatpush1.msra.mxu0 0.0
        %602 = vmatprep.subr.mxu0 0.0
        %603 = vmatpush1.msra.mxu0 0.0
        %604 = vmatprep.subr.mxu0 0.0
        %605 = vmatpush1.msra.mxu0 0.0
        %606 = vmatprep.subr.mxu0 0.0
        %607 = vmatpush1.msra.mxu0 0.0
        %608 = vmatprep.subr.mxu0 0.0
        %609 = vmatpush1.msra.mxu0 0.0
        %610 = vmatprep.subr.mxu0 0.0
        %611 = vmatpush1.msra.mxu0 0.0
        %612 = vmatprep.subr.mxu0 0.0
        %613 = vmatpush1.msra.mxu0 0.0
        %614 = vmatprep.subr.mxu0 0.0
        %615 = vmatpush1.msra.mxu0 0.0
        %616 = vmatprep.subr.mxu0 0.0
        %617 = vmatpush1.msra.mxu0 0.0
        %618 = vmatprep.subr.mxu0 0.0
        %619 = vmatpush1.msra.mxu0 0.0
        %620 = vmatprep.subr.mxu0 0.0
        %621 = vmatpush1.msra.mxu0 0.0
        %622 = vmatprep.subr.mxu0 0.0
        %623 = vmatpush1.msra.mxu0 0.0
        %624 = vmatprep.subr.mxu0 0.0
        %625 = vmatpush1.msra.mxu0 0.0
        %626 = vmatprep.subr.mxu0 0.0
        %627 = vmatpush1.msra.mxu0 0.0
        %628 = vmatprep.subr.mxu0 0.0
        %629 = vmatpush1.msra.mxu0 0.0
        %630 = vmatprep.mubr.f32.mxu0 0.0
        %631 = vmatmul.mubr.f32.gmra.mrb[0].mxu0 %v402
        %v632 = vpop.f32.mrb[0].mxu0
        %v633 = vadd.f32 %v564, %v632
        %v634 = vpop.f32.mrb[0].mxu0
        %635 = vdwg.mxu0
        %v636 = vmul.f32 %v471, 0.35355338
        %vm637 = vcmask 64512
        %v639 = vsel %vm637, %v636, 0
        %v642 = vsel %vm637, %v552, 0
        %644 = vmatprep.subr.mxu0 0.0
        %645 = vmatpush1.xpose.msra.mxu0 %v642
        %646 = vmatprep.subr.mxu0 0.0
        %647 = vmatpush1.xpose.msra.mxu0 0.0
        %648 = vmatprep.subr.mxu0 0.0
        %649 = vmatpush1.xpose.msra.mxu0 0.0
        %650 = vmatprep.subr.mxu0 0.0
        %651 = vmatpush1.xpose.msra.mxu0 0.0
        %652 = vmatprep.subr.mxu0 0.0
        %653 = vmatpush1.xpose.msra.mxu0 0.0
        %654 = vmatprep.subr.mxu0 0.0
        %655 = vmatpush1.xpose.msra.mxu0 0.0
        %656 = vmatprep.subr.mxu0 0.0
        %657 = vmatpush1.xpose.msra.mxu0 0.0
        %658 = vmatprep.subr.mxu0 0.0
        %659 = vmatpush1.xpose.msra.mxu0 0.0
        %660 = vmatprep.subr.mxu0 0.0
        %661 = vmatpush1.xpose.msra.mxu0 0.0
        %662 = vmatprep.subr.mxu0 0.0
        %663 = vmatpush1.xpose.msra.mxu0 0.0
        %664 = vmatprep.subr.mxu0 0.0
        %665 = vmatpush1.xpose.msra.mxu0 0.0
        %666 = vmatprep.subr.mxu0 0.0
        %667 = vmatpush1.xpose.msra.mxu0 0.0
        %668 = vmatprep.subr.mxu0 0.0
        %669 = vmatpush1.xpose.msra.mxu0 0.0
        %670 = vmatprep.subr.mxu0 0.0
        %671 = vmatpush1.xpose.msra.mxu0 0.0
        %672 = vmatprep.subr.mxu0 0.0
        %673 = vmatpush1.xpose.msra.mxu0 0.0
        %674 = vmatprep.subr.mxu0 0.0
        %675 = vmatpush1.xpose.msra.mxu0 0.0
        %676 = vmatprep.subr.mxu0 0.0
        %677 = vmatpush1.xpose.msra.mxu0 0.0
        %678 = vmatprep.subr.mxu0 0.0
        %679 = vmatpush1.xpose.msra.mxu0 0.0
        %680 = vmatprep.subr.mxu0 0.0
        %681 = vmatpush1.xpose.msra.mxu0 0.0
        %682 = vmatprep.subr.mxu0 0.0
        %683 = vmatpush1.xpose.msra.mxu0 0.0
        %684 = vmatprep.subr.mxu0 0.0
        %685 = vmatpush1.xpose.msra.mxu0 0.0
        %686 = vmatprep.subr.mxu0 0.0
        %687 = vmatpush1.xpose.msra.mxu0 0.0
        %688 = vmatprep.subr.mxu0 0.0
        %689 = vmatpush1.xpose.msra.mxu0 0.0
        %690 = vmatprep.subr.mxu0 0.0
        %691 = vmatpush1.xpose.msra.mxu0 0.0
        %692 = vmatprep.subr.mxu0 0.0
        %693 = vmatpush1.xpose.msra.mxu0 0.0
        %694 = vmatprep.subr.mxu0 0.0
        %695 = vmatpush1.xpose.msra.mxu0 0.0
        %696 = vmatprep.subr.mxu0 0.0
        %697 = vmatpush1.xpose.msra.mxu0 0.0
        %698 = vmatprep.subr.mxu0 0.0
        %699 = vmatpush1.xpose.msra.mxu0 0.0
        %700 = vmatprep.subr.mxu0 0.0
        %701 = vmatpush1.xpose.msra.mxu0 0.0
        %702 = vmatprep.subr.mxu0 0.0
        %703 = vmatpush1.xpose.msra.mxu0 0.0
        %704 = vmatprep.subr.mxu0 0.0
        %705 = vmatpush1.xpose.msra.mxu0 0.0
        %706 = vmatprep.subr.mxu0 0.0
        %707 = vmatpush1.xpose.msra.mxu0 0.0
        %708 = vmatprep.mubr.f32.mxu0 0.0
        %709 = vmatmul.mubr.f32.gmra.mrb[0].mxu0 %v639
        %v710 = vpop.f32.mrb[0].mxu0
        %v711 = vadd.f32 %v387, %v710
        %v712 = vpop.f32.mrb[0].mxu0
        %713 = vdwg.mxu0
        %v714 = vsel %vm637, %v711, -inf
        %715 = vmax.xlane.f32.xlu0 %v714
        %v716 = vpop.xlane.xlu0 %715
        %v717 = vsub.f32 %v711, %v716
        %v718 = vmul.f32 %v717, 1.442695
        %v719 = vpow.pop %v718
        %v720 = vsel %vm637, %v719, 0.0
        %721 = vadd.xlane.f32.xlu0 %v720
        %v722 = vpop.xlane.xlu0 %721
        %v723 = vrcp.pop %v722
        %v724 = vmul.f32 %v719, %v723
        %v726 = vsel %vm637, %v724, 0
        %728 = vmatprep.subr.mxu0 0.0
        %729 = vmatpush1.msra.mxu0 %v633
        %730 = vmatprep.subr.mxu0 0.0
        %731 = vmatpush1.msra.mxu0 0.0
        %732 = vmatprep.subr.mxu0 0.0
        %733 = vmatpush1.msra.mxu0 0.0
        %734 = vmatprep.subr.mxu0 0.0
        %735 = vmatpush1.msra.mxu0 0.0
        %736 = vmatprep.subr.mxu0 0.0
        %737 = vmatpush1.msra.mxu0 0.0
        %738 = vmatprep.subr.mxu0 0.0
        %739 = vmatpush1.msra.mxu0 0.0
        %740 = vmatprep.subr.mxu0 0.0
        %741 = vmatpush1.msra.mxu0 0.0
        %742 = vmatprep.subr.mxu0 0.0
        %743 = vmatpush1.msra.mxu0 0.0
        %744 = vmatprep.subr.mxu0 0.0
        %745 = vmatpush1.msra.mxu0 0.0
        %746 = vmatprep.subr.mxu0 0.0
        %747 = vmatpush1.msra.mxu0 0.0
        %748 = vmatprep.subr.mxu0 0.0
        %749 = vmatpush1.msra.mxu0 0.0
        %750 = vmatprep.subr.mxu0 0.0
        %751 = vmatpush1.msra.mxu0 0.0
        %752 = vmatprep.subr.mxu0 0.0
        %753 = vmatpush1.msra.mxu0 0.0
        %754 = vmatprep.subr.mxu0 0.0
        %755 = vmatpush1.msra.mxu0 0.0
        %756 = vmatprep.subr.mxu0 0.0
        %757 = vmatpush1.msra.mxu0 0.0
        %758 = vmatprep.subr.mxu0 0.0
        %759 = vmatpush1.msra.mxu0 0.0
        %760 = vmatprep.subr.mxu0 0.0
        %761 = vmatpush1.msra.mxu0 0.0
        %762 = vmatprep.subr.mxu0 0.0
        %763 = vmatpush1.msra.mxu0 0.0
        %764 = vmatprep.subr.mxu0 0.0
        %765 = vmatpush1.msra.mxu0 0.0
        %766 = vmatprep.subr.mxu0 0.0
        %767 = vmatpush1.msra.mxu0 0.0
        %768 = vmatprep.subr.mxu0 0.0
        %769 = vmatpush1.msra.mxu0 0.0
        %770 = vmatprep.subr.mxu0 0.0
        %771 = vmatpush1.msra.mxu0 0.0
        %772 = vmatprep.subr.mxu0 0.0
        %773 = vmatpush1.msra.mxu0 0.0
        %774 = vmatprep.subr.mxu0 0.0
        %775 = vmatpush1.msra.mxu0 0.0
        %776 = vmatprep.subr.mxu0 0.0
        %777 = vmatpush1.msra.mxu0 0.0
        %778 = vmatprep.subr.mxu0 0.0
        %779 = vmatpush1.msra.mxu0 0.0
        %780 = vmatprep.subr.mxu0 0.0
        %781 = vmatpush1.msra.mxu0 0.0
        %782 = vmatprep.subr.mxu0 0.0
        %783 = vmatpush1.msra.mxu0 0.0
        %784 = vmatprep.subr.mxu0 0.0
        %785 = vmatpush1.msra.mxu0 0.0
        %786 = vmatprep.subr.mxu0 0.0
        %787 = vmatpush1.msra.mxu0 0.0
        %788 = vmatprep.subr.mxu0 0.0
        %789 = vmatpush1.msra.mxu0 0.0
        %790 = vmatprep.subr.mxu0 0.0
        %791 = vmatpush1.msra.mxu0 0.0
        %792 = vmatprep.mubr.f32.mxu0 0.0
        %793 = vmatmul.mubr.f32.gmra.mrb[0].mxu0 %v726
        %v794 = vpop.f32.mrb[0].mxu0
        %v795 = vadd.f32 0.0, %v794
        %v796 = vpop.f32.mrb[0].mxu0
        %797 = vdwg.mxu0
        %798 = vrot.lane.b32.xlu0 %v636, 120
        %v799 = vpop.permute.xlu0 %798
        %800 = vrot.lane.b32.xlu0 %v552, 120
        %v801 = vpop.permute.xlu0 %800
        %v802 = vsel %vm637, %v799, 0
        %v804 = vsel %vm637, %v801, 0
        %806 = vmatprep.subr.mxu0 0.0
        %807 = vmatpush1.xpose.msra.mxu0 %v804
        %808 = vmatprep.subr.mxu0 0.0
        %809 = vmatpush1.xpose.msra.mxu0 0.0
        %810 = vmatprep.subr.mxu0 0.0
        %811 = vmatpush1.xpose.msra.mxu0 0.0
        %812 = vmatprep.subr.mxu0 0.0
        %813 = vmatpush1.xpose.msra.mxu0 0.0
        %814 = vmatprep.subr.mxu0 0.0
        %815 = vmatpush1.xpose.msra.mxu0 0.0
        %816 = vmatprep.subr.mxu0 0.0
        %817 = vmatpush1.xpose.msra.mxu0 0.0
        %818 = vmatprep.subr.mxu0 0.0
        %819 = vmatpush1.xpose.msra.mxu0 0.0
        %820 = vmatprep.subr.mxu0 0.0
        %821 = vmatpush1.xpose.msra.mxu0 0.0
        %822 = vmatprep.subr.mxu0 0.0
        %823 = vmatpush1.xpose.msra.mxu0 0.0
        %824 = vmatprep.subr.mxu0 0.0
        %825 = vmatpush1.xpose.msra.mxu0 0.0
        %826 = vmatprep.subr.mxu0 0.0
        %827 = vmatpush1.xpose.msra.mxu0 0.0
        %828 = vmatprep.subr.mxu0 0.0
        %829 = vmatpush1.xpose.msra.mxu0 0.0
        %830 = vmatprep.subr.mxu0 0.0
        %831 = vmatpush1.xpose.msra.mxu0 0.0
        %832 = vmatprep.subr.mxu0 0.0
        %833 = vmatpush1.xpose.msra.mxu0 0.0
        %834 = vmatprep.subr.mxu0 0.0
        %835 = vmatpush1.xpose.msra.mxu0 0.0
        %836 = vmatprep.subr.mxu0 0.0
        %837 = vmatpush1.xpose.msra.mxu0 0.0
        %838 = vmatprep.subr.mxu0 0.0
        %839 = vmatpush1.xpose.msra.mxu0 0.0
        %840 = vmatprep.subr.mxu0 0.0
        %841 = vmatpush1.xpose.msra.mxu0 0.0
        %842 = vmatprep.subr.mxu0 0.0
        %843 = vmatpush1.xpose.msra.mxu0 0.0
        %844 = vmatprep.subr.mxu0 0.0
        %845 = vmatpush1.xpose.msra.mxu0 0.0
        %846 = vmatprep.subr.mxu0 0.0
        %847 = vmatpush1.xpose.msra.mxu0 0.0
        %848 = vmatprep.subr.mxu0 0.0
        %849 = vmatpush1.xpose.msra.mxu0 0.0
        %850 = vmatprep.subr.mxu0 0.0
        %851 = vmatpush1.xpose.msra.mxu0 0.0
        %852 = vmatprep.subr.mxu0 0.0
        %853 = vmatpush1.xpose.msra.mxu0 0.0
        %854 = vmatprep.subr.mxu0 0.0
        %855 = vmatpush1.xpose.msra.mxu0 0.0
        %856 = vmatprep.subr.mxu0 0.0
        %857 = vmatpush1.xpose.msra.mxu0 0.0
        %858 = vmatprep.subr.mxu0 0.0
        %859 = vmatpush1.xpose.msra.mxu0 0.0
        %860 = vmatprep.subr.mxu0 0.0
        %861 = vmatpush1.xpose.msra.mxu0 0.0
        %862 = vmatprep.subr.mxu0 0.0
        %863 = vmatpush1.xpose.msra.mxu0 0.0
        %864 = vmatprep.subr.mxu0 0.0
        %865 = vmatpush1.xpose.msra.mxu0 0.0
        %866 = vmatprep.subr.mxu0 0.0
        %867 = vmatpush1.xpose.msra.mxu0 0.0
        %868 = vmatprep.subr.mxu0 0.0
        %869 = vmatpush1.xpose.msra.mxu0 0.0
        %870 = vmatprep.mubr.f32.mxu0 0.0
        %871 = vmatmul.mubr.f32.gmra.mrb[0].mxu0 %v802
        %v872 = vpop.f32.mrb[0].mxu0
        %v873 = vadd.f32 %v387, %v872
        %v874 = vpop.f32.mrb[0].mxu0
        %875 = vdwg.mxu0
        %v876 = vsel %vm637, %v873, -inf
        %877 = vmax.xlane.f32.xlu0 %v876
        %v878 = vpop.xlane.xlu0 %877
        %v879 = vsub.f32 %v873, %v878
        %v880 = vmul.f32 %v879, 1.442695
        %v881 = vpow.pop %v880
        %v882 = vsel %vm637, %v881, 0.0
        %883 = vadd.xlane.f32.xlu0 %v882
        %v884 = vpop.xlane.xlu0 %883
        %v885 = vrcp.pop %v884
        %v886 = vmul.f32 %v881, %v885
        %888 = vrot.lane.b32.xlu0 %v633, 120
        %v889 = vpop.permute.xlu0 %888
        %v892 = vsel %vm637, %v886, 0
        %894 = vmatprep.subr.mxu0 0.0
        %895 = vmatpush1.msra.mxu0 %v889
        %896 = vmatprep.subr.mxu0 0.0
        %897 = vmatpush1.msra.mxu0 0.0
        %898 = vmatprep.subr.mxu0 0.0
        %899 = vmatpush1.msra.mxu0 0.0
        %900 = vmatprep.subr.mxu0 0.0
        %901 = vmatpush1.msra.mxu0 0.0
        %902 = vmatprep.subr.mxu0 0.0
        %903 = vmatpush1.msra.mxu0 0.0
        %904 = vmatprep.subr.mxu0 0.0
        %905 = vmatpush1.msra.mxu0 0.0
        %906 = vmatprep.subr.mxu0 0.0
        %907 = vmatpush1.msra.mxu0 0.0
        %908 = vmatprep.subr.mxu0 0.0
        %909 = vmatpush1.msra.mxu0 0.0
        %910 = vmatprep.subr.mxu0 0.0
        %911 = vmatpush1.msra.mxu0 0.0
        %912 = vmatprep.subr.mxu0 0.0
        %913 = vmatpush1.msra.mxu0 0.0
        %914 = vmatprep.subr.mxu0 0.0
        %915 = vmatpush1.msra.mxu0 0.0
        %916 = vmatprep.subr.mxu0 0.0
        %917 = vmatpush1.msra.mxu0 0.0
        %918 = vmatprep.subr.mxu0 0.0
        %919 = vmatpush1.msra.mxu0 0.0
        %920 = vmatprep.subr.mxu0 0.0
        %921 = vmatpush1.msra.mxu0 0.0
        %922 = vmatprep.subr.mxu0 0.0
        %923 = vmatpush1.msra.mxu0 0.0
        %924 = vmatprep.subr.mxu0 0.0
        %925 = vmatpush1.msra.mxu0 0.0
        %926 = vmatprep.subr.mxu0 0.0
        %927 = vmatpush1.msra.mxu0 0.0
        %928 = vmatprep.subr.mxu0 0.0
        %929 = vmatpush1.msra.mxu0 0.0
        %930 = vmatprep.subr.mxu0 0.0
        %931 = vmatpush1.msra.mxu0 0.0
        %932 = vmatprep.subr.mxu0 0.0
        %933 = vmatpush1.msra.mxu0 0.0
        %934 = vmatprep.subr.mxu0 0.0
        %935 = vmatpush1.msra.mxu0 0.0
        %936 = vmatprep.subr.mxu0 0.0
        %937 = vmatpush1.msra.mxu0 0.0
        %938 = vmatprep.subr.mxu0 0.0
        %939 = vmatpush1.msra.mxu0 0.0
        %940 = vmatprep.subr.mxu0 0.0
        %941 = vmatpush1.msra.mxu0 0.0
        %942 = vmatprep.subr.mxu0 0.0
        %943 = vmatpush1.msra.mxu0 0.0
        %944 = vmatprep.subr.mxu0 0.0
        %945 = vmatpush1.msra.mxu0 0.0
        %946 = vmatprep.subr.mxu0 0.0
        %947 = vmatpush1.msra.mxu0 0.0
        %948 = vmatprep.subr.mxu0 0.0
        %949 = vmatpush1.msra.mxu0 0.0
        %950 = vmatprep.subr.mxu0 0.0
        %951 = vmatpush1.msra.mxu0 0.0
        %952 = vmatprep.subr.mxu0 0.0
        %953 = vmatpush1.msra.mxu0 0.0
        %954 = vmatprep.subr.mxu0 0.0
        %955 = vmatpush1.msra.mxu0 0.0
        %956 = vmatprep.subr.mxu0 0.0
        %957 = vmatpush1.msra.mxu0 0.0
        %958 = vmatprep.mubr.f32.mxu0 0.0
        %959 = vmatmul.mubr.f32.gmra.mrb[0].mxu0 %v892
        %v960 = vpop.f32.mrb[0].mxu0
        %v961 = vadd.f32 0.0, %v960
        %v962 = vpop.f32.mrb[0].mxu0
        %963 = vdwg.mxu0
        %964 = vrot.lane.b32.xlu0 %v636, 112
        %v965 = vpop.permute.xlu0 %964
        %966 = vrot.lane.b32.xlu0 %v552, 112
        %v967 = vpop.permute.xlu0 %966
        %v968 = vsel %vm637, %v965, 0
        %v970 = vsel %vm637, %v967, 0
        %972 = vmatprep.subr.mxu0 0.0
        %973 = vmatpush1.xpose.msra.mxu0 %v970
        %974 = vmatprep.subr.mxu0 0.0
        %975 = vmatpush1.xpose.msra.mxu0 0.0
        %976 = vmatprep.subr.mxu0 0.0
        %977 = vmatpush1.xpose.msra.mxu0 0.0
        %978 = vmatprep.subr.mxu0 0.0
        %979 = vmatpush1.xpose.msra.mxu0 0.0
        %980 = vmatprep.subr.mxu0 0.0
        %981 = vmatpush1.xpose.msra.mxu0 0.0
        %982 = vmatprep.subr.mxu0 0.0
        %983 = vmatpush1.xpose.msra.mxu0 0.0
        %984 = vmatprep.subr.mxu0 0.0
        %985 = vmatpush1.xpose.msra.mxu0 0.0
        %986 = vmatprep.subr.mxu0 0.0
        %987 = vmatpush1.xpose.msra.mxu0 0.0
        %988 = vmatprep.subr.mxu0 0.0
        %989 = vmatpush1.xpose.msra.mxu0 0.0
        %990 = vmatprep.subr.mxu0 0.0
        %991 = vmatpush1.xpose.msra.mxu0 0.0
        %992 = vmatprep.subr.mxu0 0.0
        %993 = vmatpush1.xpose.msra.mxu0 0.0
        %994 = vmatprep.subr.mxu0 0.0
        %995 = vmatpush1.xpose.msra.mxu0 0.0
        %996 = vmatprep.subr.mxu0 0.0
        %997 = vmatpush1.xpose.msra.mxu0 0.0
        %998 = vmatprep.subr.mxu0 0.0
        %999 = vmatpush1.xpose.msra.mxu0 0.0
        %1000 = vmatprep.subr.mxu0 0.0
        %1001 = vmatpush1.xpose.msra.mxu0 0.0
        %1002 = vmatprep.subr.mxu0 0.0
        %1003 = vmatpush1.xpose.msra.mxu0 0.0
        %1004 = vmatprep.subr.mxu0 0.0
        %1005 = vmatpush1.xpose.msra.mxu0 0.0
        %1006 = vmatprep.subr.mxu0 0.0
        %1007 = vmatpush1.xpose.msra.mxu0 0.0
        %1008 = vmatprep.subr.mxu0 0.0
        %1009 = vmatpush1.xpose.msra.mxu0 0.0
        %1010 = vmatprep.subr.mxu0 0.0
        %1011 = vmatpush1.xpose.msra.mxu0 0.0
        %1012 = vmatprep.subr.mxu0 0.0
        %1013 = vmatpush1.xpose.msra.mxu0 0.0
        %1014 = vmatprep.subr.mxu0 0.0
        %1015 = vmatpush1.xpose.msra.mxu0 0.0
        %1016 = vmatprep.subr.mxu0 0.0
        %1017 = vmatpush1.xpose.msra.mxu0 0.0
        %1018 = vmatprep.subr.mxu0 0.0
        %1019 = vmatpush1.xpose.msra.mxu0 0.0
        %1020 = vmatprep.subr.mxu0 0.0
        %1021 = vmatpush1.xpose.msra.mxu0 0.0
        %1022 = vmatprep.subr.mxu0 0.0
        %1023 = vmatpush1.xpose.msra.mxu0 0.0
        %1024 = vmatprep.subr.mxu0 0.0
        %1025 = vmatpush1.xpose.msra.mxu0 0.0
        %1026 = vmatprep.subr.mxu0 0.0
        %1027 = vmatpush1.xpose.msra.mxu0 0.0
        %1028 = vmatprep.subr.mxu0 0.0
        %1029 = vmatpush1.xpose.msra.mxu0 0.0
        %1030 = vmatprep.subr.mxu0 0.0
        %1031 = vmatpush1.xpose.msra.mxu0 0.0
        %1032 = vmatprep.subr.mxu0 0.0
        %1033 = vmatpush1.xpose.msra.mxu0 0.0
        %1034 = vmatprep.subr.mxu0 0.0
        %1035 = vmatpush1.xpose.msra.mxu0 0.0
        %1036 = vmatprep.mubr.f32.mxu0 0.0
        %1037 = vmatmul.mubr.f32.gmra.mrb[0].mxu0 %v968
        %v1038 = vpop.f32.mrb[0].mxu0
        %v1039 = vadd.f32 %v387, %v1038
        %v1040 = vpop.f32.mrb[0].mxu0
        %1041 = vdwg.mxu0
        %v1042 = vsel %vm637, %v1039, -inf
        %1043 = vmax.xlane.f32.xlu0 %v1042
        %v1044 = vpop.xlane.xlu0 %1043
        %v1045 = vsub.f32 %v1039, %v1044
        %v1046 = vmul.f32 %v1045, 1.442695
        %v1047 = vpow.pop %v1046
        %v1048 = vsel %vm637, %v1047, 0.0
        %1049 = vadd.xlane.f32.xlu0 %v1048
        %v1050 = vpop.xlane.xlu0 %1049
        %v1051 = vrcp.pop %v1050
        %v1052 = vmul.f32 %v1047, %v1051
        %1053 = vrot.lane.b32.xlu0 %v633, 112
        %v1054 = vpop.permute.xlu0 %1053
        %v1057 = vsel %vm637, %v1052, 0
        %1059 = vmatprep.subr.mxu0 0.0
        %1060 = vmatpush1.msra.mxu0 %v1054
        %1061 = vmatprep.subr.mxu0 0.0
        %1062 = vmatpush1.msra.mxu0 0.0
        %1063 = vmatprep.subr.mxu0 0.0
        %1064 = vmatpush1.msra.mxu0 0.0
        %1065 = vmatprep.subr.mxu0 0.0
        %1066 = vmatpush1.msra.mxu0 0.0
        %1067 = vmatprep.subr.mxu0 0.0
        %1068 = vmatpush1.msra.mxu0 0.0
        %1069 = vmatprep.subr.mxu0 0.0
        %1070 = vmatpush1.msra.mxu0 0.0
        %1071 = vmatprep.subr.mxu0 0.0
        %1072 = vmatpush1.msra.mxu0 0.0
        %1073 = vmatprep.subr.mxu0 0.0
        %1074 = vmatpush1.msra.mxu0 0.0
        %1075 = vmatprep.subr.mxu0 0.0
        %1076 = vmatpush1.msra.mxu0 0.0
        %1077 = vmatprep.subr.mxu0 0.0
        %1078 = vmatpush1.msra.mxu0 0.0
        %1079 = vmatprep.subr.mxu0 0.0
        %1080 = vmatpush1.msra.mxu0 0.0
        %1081 = vmatprep.subr.mxu0 0.0
        %1082 = vmatpush1.msra.mxu0 0.0
        %1083 = vmatprep.subr.mxu0 0.0
        %1084 = vmatpush1.msra.mxu0 0.0
        %1085 = vmatprep.subr.mxu0 0.0
        %1086 = vmatpush1.msra.mxu0 0.0
        %1087 = vmatprep.subr.mxu0 0.0
        %1088 = vmatpush1.msra.mxu0 0.0
        %1089 = vmatprep.subr.mxu0 0.0
        %1090 = vmatpush1.msra.mxu0 0.0
        %1091 = vmatprep.subr.mxu0 0.0
        %1092 = vmatpush1.msra.mxu0 0.0
        %1093 = vmatprep.subr.mxu0 0.0
        %1094 = vmatpush1.msra.mxu0 0.0
        %1095 = vmatprep.subr.mxu0 0.0
        %1096 = vmatpush1.msra.mxu0 0.0
        %1097 = vmatprep.subr.mxu0 0.0
        %1098 = vmatpush1.msra.mxu0 0.0
        %1099 = vmatprep.subr.mxu0 0.0
        %1100 = vmatpush1.msra.mxu0 0.0
        %1101 = vmatprep.subr.mxu0 0.0
        %1102 = vmatpush1.msra.mxu0 0.0
        %1103 = vmatprep.subr.mxu0 0.0
        %1104 = vmatpush1.msra.mxu0 0.0
        %1105 = vmatprep.subr.mxu0 0.0
        %1106 = vmatpush1.msra.mxu0 0.0
        %1107 = vmatprep.subr.mxu0 0.0
        %1108 = vmatpush1.msra.mxu0 0.0
        %1109 = vmatprep.subr.mxu0 0.0
        %1110 = vmatpush1.msra.mxu0 0.0
        %1111 = vmatprep.subr.mxu0 0.0
        %1112 = vmatpush1.msra.mxu0 0.0
        %1113 = vmatprep.subr.mxu0 0.0
        %1114 = vmatpush1.msra.mxu0 0.0
        %1115 = vmatprep.subr.mxu0 0.0
        %1116 = vmatpush1.msra.mxu0 0.0
        %1117 = vmatprep.subr.mxu0 0.0
        %1118 = vmatpush1.msra.mxu0 0.0
        %1119 = vmatprep.subr.mxu0 0.0
        %1120 = vmatpush1.msra.mxu0 0.0
        %1121 = vmatprep.subr.mxu0 0.0
        %1122 = vmatpush1.msra.mxu0 0.0
        %1123 = vmatprep.mubr.f32.mxu0 0.0
        %1124 = vmatmul.mubr.f32.gmra.mrb[0].mxu0 %v1057
        %v1125 = vpop.f32.mrb[0].mxu0
        %v1126 = vadd.f32 0.0, %v1125
        %v1127 = vpop.f32.mrb[0].mxu0
        %1128 = vdwg.mxu0
        %1129 = vrot.lane.b32.xlu0 %v636, 104
        %v1130 = vpop.permute.xlu0 %1129
        %1131 = vrot.lane.b32.xlu0 %v552, 104
        %v1132 = vpop.permute.xlu0 %1131
        %v1133 = vsel %vm637, %v1130, 0
        %v1135 = vsel %vm637, %v1132, 0
        %1137 = vmatprep.subr.mxu0 0.0
        %1138 = vmatpush1.xpose.msra.mxu0 %v1135
        %1139 = vmatprep.subr.mxu0 0.0
        %1140 = vmatpush1.xpose.msra.mxu0 0.0
        %1141 = vmatprep.subr.mxu0 0.0
        %1142 = vmatpush1.xpose.msra.mxu0 0.0
        %1143 = vmatprep.subr.mxu0 0.0
        %1144 = vmatpush1.xpose.msra.mxu0 0.0
        %1145 = vmatprep.subr.mxu0 0.0
        %1146 = vmatpush1.xpose.msra.mxu0 0.0
        %1147 = vmatprep.subr.mxu0 0.0
        %1148 = vmatpush1.xpose.msra.mxu0 0.0
        %1149 = vmatprep.subr.mxu0 0.0
        %1150 = vmatpush1.xpose.msra.mxu0 0.0
        %1151 = vmatprep.subr.mxu0 0.0
        %1152 = vmatpush1.xpose.msra.mxu0 0.0
        %1153 = vmatprep.subr.mxu0 0.0
        %1154 = vmatpush1.xpose.msra.mxu0 0.0
        %1155 = vmatprep.subr.mxu0 0.0
        %1156 = vmatpush1.xpose.msra.mxu0 0.0
        %1157 = vmatprep.subr.mxu0 0.0
        %1158 = vmatpush1.xpose.msra.mxu0 0.0
        %1159 = vmatprep.subr.mxu0 0.0
        %1160 = vmatpush1.xpose.msra.mxu0 0.0
        %1161 = vmatprep.subr.mxu0 0.0
        %1162 = vmatpush1.xpose.msra.mxu0 0.0
        %1163 = vmatprep.subr.mxu0 0.0
        %1164 = vmatpush1.xpose.msra.mxu0 0.0
        %1165 = vmatprep.subr.mxu0 0.0
        %1166 = vmatpush1.xpose.msra.mxu0 0.0
        %1167 = vmatprep.subr.mxu0 0.0
        %1168 = vmatpush1.xpose.msra.mxu0 0.0
        %1169 = vmatprep.subr.mxu0 0.0
        %1170 = vmatpush1.xpose.msra.mxu0 0.0
        %1171 = vmatprep.subr.mxu0 0.0
        %1172 = vmatpush1.xpose.msra.mxu0 0.0
        %1173 = vmatprep.subr.mxu0 0.0
        %1174 = vmatpush1.xpose.msra.mxu0 0.0
        %1175 = vmatprep.subr.mxu0 0.0
        %1176 = vmatpush1.xpose.msra.mxu0 0.0
        %1177 = vmatprep.subr.mxu0 0.0
        %1178 = vmatpush1.xpose.msra.mxu0 0.0
        %1179 = vmatprep.subr.mxu0 0.0
        %1180 = vmatpush1.xpose.msra.mxu0 0.0
        %1181 = vmatprep.subr.mxu0 0.0
        %1182 = vmatpush1.xpose.msra.mxu0 0.0
        %1183 = vmatprep.subr.mxu0 0.0
        %1184 = vmatpush1.xpose.msra.mxu0 0.0
        %1185 = vmatprep.subr.mxu0 0.0
        %1186 = vmatpush1.xpose.msra.mxu0 0.0
        %1187 = vmatprep.subr.mxu0 0.0
        %1188 = vmatpush1.xpose.msra.mxu0 0.0
        %1189 = vmatprep.subr.mxu0 0.0
        %1190 = vmatpush1.xpose.msra.mxu0 0.0
        %1191 = vmatprep.subr.mxu0 0.0
        %1192 = vmatpush1.xpose.msra.mxu0 0.0
        %1193 = vmatprep.subr.mxu0 0.0
        %1194 = vmatpush1.xpose.msra.mxu0 0.0
        %1195 = vmatprep.subr.mxu0 0.0
        %1196 = vmatpush1.xpose.msra.mxu0 0.0
        %1197 = vmatprep.subr.mxu0 0.0
        %1198 = vmatpush1.xpose.msra.mxu0 0.0
        %1199 = vmatprep.subr.mxu0 0.0
        %1200 = vmatpush1.xpose.msra.mxu0 0.0
        %1201 = vmatprep.mubr.f32.mxu0 0.0
        %1202 = vmatmul.mubr.f32.gmra.mrb[0].mxu0 %v1133
        %v1203 = vpop.f32.mrb[0].mxu0
        %v1204 = vadd.f32 %v387, %v1203
        %v1205 = vpop.f32.mrb[0].mxu0
        %1206 = vdwg.mxu0
        %v1207 = vsel %vm637, %v1204, -inf
        %1208 = vmax.xlane.f32.xlu0 %v1207
        %v1209 = vpop.xlane.xlu0 %1208
        %v1210 = vsub.f32 %v1204, %v1209
        %v1211 = vmul.f32 %v1210, 1.442695
        %v1212 = vpow.pop %v1211
        %v1213 = vsel %vm637, %v1212, 0.0
        %1214 = vadd.xlane.f32.xlu0 %v1213
        %v1215 = vpop.xlane.xlu0 %1214
        %v1216 = vrcp.pop %v1215
        %v1217 = vmul.f32 %v1212, %v1216
        %1218 = vrot.lane.b32.xlu0 %v633, 104
        %v1219 = vpop.permute.xlu0 %1218
        %v1222 = vsel %vm637, %v1217, 0
        %1224 = vmatprep.subr.mxu0 0.0
        %1225 = vmatpush1.msra.mxu0 %v1219
        %1226 = vmatprep.subr.mxu0 0.0
        %1227 = vmatpush1.msra.mxu0 0.0
        %1228 = vmatprep.subr.mxu0 0.0
        %1229 = vmatpush1.msra.mxu0 0.0
        %1230 = vmatprep.subr.mxu0 0.0
        %1231 = vmatpush1.msra.mxu0 0.0
        %1232 = vmatprep.subr.mxu0 0.0
        %1233 = vmatpush1.msra.mxu0 0.0
        %1234 = vmatprep.subr.mxu0 0.0
        %1235 = vmatpush1.msra.mxu0 0.0
        %1236 = vmatprep.subr.mxu0 0.0
        %1237 = vmatpush1.msra.mxu0 0.0
        %1238 = vmatprep.subr.mxu0 0.0
        %1239 = vmatpush1.msra.mxu0 0.0
        %1240 = vmatprep.subr.mxu0 0.0
        %1241 = vmatpush1.msra.mxu0 0.0
        %1242 = vmatprep.subr.mxu0 0.0
        %1243 = vmatpush1.msra.mxu0 0.0
        %1244 = vmatprep.subr.mxu0 0.0
        %1245 = vmatpush1.msra.mxu0 0.0
        %1246 = vmatprep.subr.mxu0 0.0
        %1247 = vmatpush1.msra.mxu0 0.0
        %1248 = vmatprep.subr.mxu0 0.0
        %1249 = vmatpush1.msra.mxu0 0.0
        %1250 = vmatprep.subr.mxu0 0.0
        %1251 = vmatpush1.msra.mxu0 0.0
        %1252 = vmatprep.subr.mxu0 0.0
        %1253 = vmatpush1.msra.mxu0 0.0
        %1254 = vmatprep.subr.mxu0 0.0
        %1255 = vmatpush1.msra.mxu0 0.0
        %1256 = vmatprep.subr.mxu0 0.0
        %1257 = vmatpush1.msra.mxu0 0.0
        %1258 = vmatprep.subr.mxu0 0.0
        %1259 = vmatpush1.msra.mxu0 0.0
        %1260 = vmatprep.subr.mxu0 0.0
        %1261 = vmatpush1.msra.mxu0 0.0
        %1262 = vmatprep.subr.mxu0 0.0
        %1263 = vmatpush1.msra.mxu0 0.0
        %1264 = vmatprep.subr.mxu0 0.0
        %1265 = vmatpush1.msra.mxu0 0.0
        %1266 = vmatprep.subr.mxu0 0.0
        %1267 = vmatpush1.msra.mxu0 0.0
        %1268 = vmatprep.subr.mxu0 0.0
        %1269 = vmatpush1.msra.mxu0 0.0
        %1270 = vmatprep.subr.mxu0 0.0
        %1271 = vmatpush1.msra.mxu0 0.0
        %1272 = vmatprep.subr.mxu0 0.0
        %1273 = vmatpush1.msra.mxu0 0.0
        %1274 = vmatprep.subr.mxu0 0.0
        %1275 = vmatpush1.msra.mxu0 0.0
        %1276 = vmatprep.subr.mxu0 0.0
        %1277 = vmatpush1.msra.mxu0 0.0
        %1278 = vmatprep.subr.mxu0 0.0
        %1279 = vmatpush1.msra.mxu0 0.0
        %1280 = vmatprep.subr.mxu0 0.0
        %1281 = vmatpush1.msra.mxu0 0.0
        %1282 = vmatprep.subr.mxu0 0.0
        %1283 = vmatpush1.msra.mxu0 0.0
        %1284 = vmatprep.subr.mxu0 0.0
        %1285 = vmatpush1.msra.mxu0 0.0
        %1286 = vmatprep.subr.mxu0 0.0
        %1287 = vmatpush1.msra.mxu0 0.0
        %1288 = vmatprep.mubr.f32.mxu0 0.0
        %1289 = vmatmul.mubr.f32.gmra.mrb[0].mxu0 %v1222
        %v1290 = vpop.f32.mrb[0].mxu0
        %v1291 = vadd.f32 0.0, %v1290
        %v1292 = vpop.f32.mrb[0].mxu0
        %1293 = vdwg.mxu0
        %1295 = vrot.lane.b32.xlu0 %v961, 8
        %v1296 = vpop.permute.xlu0 %1295
        %1299 = vrot.lane.b32.xlu0 %v1126, 16
        %v1300 = vpop.permute.xlu0 %1299
        %1303 = vrot.lane.b32.xlu0 %v1291, 24
        %v1304 = vpop.permute.xlu0 %1303
        %v1306 = vsel %vm637, %v795, %v1296
        %vm1307 = vcmask 130048
        %v1308 = vsel %vm1307, %v1306, %v1300
        %vm1309 = vcmask 195584
        %v1310 = vsel %vm1309, %v1308, %v1304
        %1311 = vst.msk [vmem:[%s375] sm:$0xff] %vm400, %v1310
        %s1312 = sand.u32 %s213, 1
        %s1313 = scalar_lea.sflag [#allocation4], %s1312
        %s1314 = sand.u32 %s213, 1
        %s1315 = smul.addr %s1314, 8
        %s1316 = scalar_lea.vmem [#allocation10], %s1315
        // Predicated region
        $region69: #{tpu_custom_call.1} parent=51 // pred_check
          %p1317 = pneg %p223
        $region70: #{tpu_custom_call.1} parent=51 // pred_check_branch
          %1319 = sbr.rel (%p1317) target = $region72
        $region71: #{tpu_custom_call.1} parent=51 // pred_region
          %s1321 = ssub.s32 128, 128
          %1322 = vsyncadd %s1313, %s1321
          %s1323 = smul.addr %s27, 128
          %s1324 = scalar_lea.hbm %s8, %s1323
          %s1326 = sshll.u32 %s1316, 4
          %s1327 = int_to_ptr.vmem [resolvable:$true] %s1326
          %1329 = dma.vmem_to_hbm [thread:$0]  %s1327, 128, %s1324, %s1313
        $region72: #{tpu_custom_call.1} parent=51 // pred_fallthru
          _
      $region52: #{tpu_custom_call.1} parent=5 // pred_fallthru
        _
      %p1330 = scmp.le.s32.totalorder 2, %s22
      // Predicated region
      $region73: #{tpu_custom_call.1} parent=5 // pred_check
        %p1331 = pneg %p1330
      $region74: #{tpu_custom_call.1} parent=5 // pred_check_branch
        %1333 = sbr.rel (%p1331) target = $region76
      $region75: #{tpu_custom_call.1} parent=5 // pred_region
        %s1334 = ssub.s32 %s22, 2
        // Predicated region
        $region77: #{tpu_custom_call.1} parent=75 // pred_check
          %p1335 = pneg %p229
        $region78: #{tpu_custom_call.1} parent=75 // pred_check_branch
          %1337 = sbr.rel (%p1335) target = $region80
        $region79: #{tpu_custom_call.1} parent=75 // pred_region
          %s1338 = sand.u32 %s214, 1
          %s1339 = scalar_lea.sflag [#allocation4], %s1338
          %s1340 = sand.u32 %s214, 1
          %s1341 = smul.addr %s1340, 8
          %s1342 = scalar_lea.vmem [#allocation10], %s1341
          %1343 = dma.done %s1339, 128
        $region80: #{tpu_custom_call.1} parent=75 // pred_fallthru
          _
      $region76: #{tpu_custom_call.1} parent=5 // pred_fallthru
        _
    $region6: #{tpu_custom_call.1} parent=1 // loop_footer
      %s26 = sadd.s32 1, %s22
    $region7: #{tpu_custom_call.1} parent=1 // loop_footer_branch
      %21 = sbr.rel target = $region3
    $region8: #{tpu_custom_call.1} parent=1 // loop_exit
      _
    %1344 = vsyncpa [#allocation3], 1
    %s1345 = scalar_lea.sflag [#allocation3], 1
    %1346 = vsyncpa %s1345, 1
    %1347 = vsyncpa [#allocation6], 1
    %1348 = vsyncpa [#allocation9], 1
    %1349 = vsyncpa [#allocation4], 1
    %s1350 = scalar_lea.sflag [#allocation4], 1
    %1351 = vsyncpa %s1350, 1

</llo_original>
